<compile_context>
chip_gen: v6e
topology: v6e:2x2x1
jax: 0.10.0
libtpu: 0.0.40
codegen_flags: <defaults>
</compile_context>

<pallas_src>
import math

import jax
import jax.numpy as jnp
import numpy as np
from jax.experimental import pallas as pl
from jax.experimental.pallas import tpu as pltpu


# ----------------------------------------------------------------------------
# Host-side (plain jnp) construction of the separable one-hot bilinear slabs.
# wxT[x, p] / wyT[y, p] hold the x- / y-tap weights of output pixel p = h*W+w.
# Out-of-range taps never match a row index in [0, W) / [0, H), which
# reproduces grid_sample's zeros padding exactly (no explicit masks needed).
# ----------------------------------------------------------------------------
def _bilinear_slabs(theta, H, W):
    f32 = jnp.float32
    P = H * W
    p = jnp.arange(P, dtype=jnp.int32)
    h_i = (p // W).astype(f32)
    w_i = (p % W).astype(f32)

    # affine_grid base coordinates (align_corners=False -> pixel centres).
    xn = (2.0 * w_i + 1.0) / W - 1.0
    yn = (2.0 * h_i + 1.0) / H - 1.0
    theta = theta.astype(f32)
    gx = theta[0, 0] * xn + theta[0, 1] * yn + theta[0, 2]
    gy = theta[1, 0] * xn + theta[1, 1] * yn + theta[1, 2]

    # grid_sample un-normalisation (align_corners=True).
    ix = (gx + 1.0) * 0.5 * (W - 1)
    iy = (gy + 1.0) * 0.5 * (H - 1)

    x0f = jnp.floor(ix)
    y0f = jnp.floor(iy)
    x0 = x0f.astype(jnp.int32)
    y0 = y0f.astype(jnp.int32)
    wx1 = ix - x0f
    wy1 = iy - y0f

    xi = jnp.arange(W, dtype=jnp.int32)[:, None]               # (W, 1)
    yi = jnp.arange(H, dtype=jnp.int32)[:, None]               # (H, 1)
    wxT = (jnp.where(xi == x0[None, :], 1.0 - wx1, 0.0)
           + jnp.where(xi == (x0 + 1)[None, :], wx1, 0.0)).astype(f32)   # (W, P)
    wyT = (jnp.where(yi == y0[None, :], 1.0 - wy1, 0.0)
           + jnp.where(yi == (y0 + 1)[None, :], wy1, 0.0)).astype(f32)   # (H, P)
    return wxT, wyT


# ----------------------------------------------------------------------------
# Fused bilinear-sample kernel (single gridless pallas_call, all VMEM).
#   x_ref  : (C_pad*H, W)  f32   image rows ordered (c, h), zero-padded channels
#   wx_ref : (W, P)        f32   one-hot x-tap weights
#   wy_ref : (H, P)        f32   one-hot y-tap weights
#   o_ref  : (C_pad, P)    f32   sampled output, lane dense (P = H*W)
# ----------------------------------------------------------------------------
def _grid_sample_kernel(x_ref, wx_ref, wy_ref, o_ref):
    C_pad, P = o_ref.shape
    H = wy_ref.shape[0]
    # x-contraction on the MXU: t[(c,h), p] = sum_x X[(c,h), x] * wxT[x, p]
    t = jnp.dot(x_ref[...], wx_ref[...], preferred_element_type=jnp.float32)
    # y-contraction for all channels at once (VPU multiply + sublane reduce),
    # followed by a single (8,128)-aligned unmasked store.
    t3 = t.reshape(C_pad, H, P)
    o_ref[...] = jnp.sum(t3 * wy_ref[...][None, :, :], axis=1)


# ----------------------------------------------------------------------------
# Wrapper: Pallas-backed InverseModel.forward(angle).
# ----------------------------------------------------------------------------
def inverse_model_forward(angle, x, theta):
    # The original module computes cos/sin of `angle` but never uses them; the
    # sampling grid is driven purely by theta = ones(2, 3). Kept for parity.
    _ = (jnp.cos(angle), jnp.sin(angle))

    N, C, H, W = x.shape
    assert N == 1, "InverseModel uses a fixed (1, 3, 32, 32) input buffer"
    C_pad = ((C + 7) // 8) * 8          # pad channels to a full sublane group
    P = H * W

    wxT, wyT = _bilinear_slabs(theta, H, W)
    x_pad = jnp.pad(x[0].astype(jnp.float32), ((0, C_pad - C), (0, 0), (0, 0)))
    x_rows = x_pad.reshape(C_pad * H, W)

    out_flat = pl.pallas_call(
        _grid_sample_kernel,
        out_shape=jax.ShapeDtypeStruct((C_pad, P), jnp.float32),
        in_specs=[
            pl.BlockSpec(memory_space=pltpu.MemorySpace.VMEM),   # image rows
            pl.BlockSpec(memory_space=pltpu.MemorySpace.VMEM),   # wxT slab
            pl.BlockSpec(memory_space=pltpu.MemorySpace.VMEM),   # wyT slab
        ],
        out_specs=pl.BlockSpec(memory_space=pltpu.MemorySpace.VMEM),
    )(x_rows, wxT, wyT)

    return out_flat[:C].reshape(N, C, H, W)


inverse_model_forward_jit = jax.jit(inverse_model_forward)


# ----------------------------------------------------------------------------
# Pure-JAX reference (affine_grid align_corners=False + grid_sample bilinear,
# zeros padding, align_corners=True) for the correctness check.
# ----------------------------------------------------------------------------
def inverse_model_ref(angle, x, theta):
    del angle  # unused by the original forward
    N, C, H, W = x.shape
    xs = (2.0 * jnp.arange(W, dtype=jnp.float32) + 1.0) / W - 1.0
    ys = (2.0 * jnp.arange(H, dtype=jnp.float32) + 1.0) / H - 1.0
    xg, yg = jnp.meshgrid(xs, ys, indexing="xy")                 # (H, W)
    gx = theta[0, 0] * xg + theta[0, 1] * yg + theta[0, 2]
    gy = theta[1, 0] * xg + theta[1, 1] * yg + theta[1, 2]
    ix = (gx + 1.0) * 0.5 * (W - 1)
    iy = (gy + 1.0) * 0.5 * (H - 1)
    x0 = jnp.floor(ix).astype(jnp.int32); x1 = x0 + 1
    y0 = jnp.floor(iy).astype(jnp.int32); y1 = y0 + 1
    wx1 = ix - x0.astype(jnp.float32); wx0 = 1.0 - wx1
    wy1 = iy - y0.astype(jnp.float32); wy0 = 1.0 - wy1
    xq = x[0]                                                    # (C, H, W)

    def corner(yc, xc, wgt):
        valid = ((xc >= 0) & (xc < W) & (yc >= 0) & (yc < H)).astype(x.dtype)
        v = xq[:, jnp.clip(yc, 0, H - 1), jnp.clip(xc, 0, W - 1)]  # (C, H, W)
        return v * (valid * wgt)[None]

    out = (corner(y0, x0, wy0 * wx0) + corner(y0, x1, wy0 * wx1)
           + corner(y1, x0, wy1 * wx0) + corner(y1, x1, wy1 * wx1))
    return out[None]                                             # (1, C, H, W)


if __name__ == "__main__":
    key = jax.random.PRNGKey(0)
    # Fixed module buffer: X ~ randn(1, 3, 32, 32) (deterministic stand-in).
    x = jax.random.normal(key, (1, 3, 32, 32), jnp.float32)
    # R = ones(2, 3); theta = R.unsqueeze(0).repeat(N, 1, 1) with N = 1.
    theta = jnp.ones((2, 3), jnp.float32)
    angle = jnp.float32(math.pi / 4.0)   # ignored by the original forward

    out = jax.block_until_ready(inverse_model_forward_jit(angle, x, theta))
    ref = jax.block_until_ready(inverse_model_ref(angle, x, theta))
    np.testing.assert_allclose(np.asarray(out), np.asarray(ref),
                               rtol=1e-5, atol=1e-5)
    assert out.shape == (1, 3, 32, 32)
    print("KERNEL_OK")
</pallas_src>

<mosaic_0001>
module attributes {stable_mosaic.version = 11 : i64} {
  func.func @_grid_sample_kernel(%arg0: memref<256x32xf32, #tpu.memory_space<vmem>>, %arg1: memref<32x1024xf32, #tpu.memory_space<vmem>>, %arg2: memref<32x1024xf32, #tpu.memory_space<vmem>>, %arg3: memref<8x1024xf32, #tpu.memory_space<vmem>>) attributes {dimension_semantics = [], scalar_prefetch = 0 : i64, scratch_operands = 0 : i64, tpu.core_type = #tpu.core_type<tc>} {
    %c0 = arith.constant 0 : index
    %c0_0 = arith.constant 0 : index
    %0 = vector.load %arg0[%c0, %c0_0] : memref<256x32xf32, #tpu.memory_space<vmem>>, vector<256x32xf32>
    %c0_1 = arith.constant 0 : index
    %c0_2 = arith.constant 0 : index
    %1 = vector.load %arg1[%c0_1, %c0_2] : memref<32x1024xf32, #tpu.memory_space<vmem>>, vector<32x1024xf32>
    %cst = arith.constant dense<0.000000e+00> : vector<256x1024xf32>
    %2 = tpu.matmul %0, %1, %cst {dimension_numbers = #tpu.dot_dimension_numbers<[1], [0], [0], [1], [0, 0, 1, 1], [], []>} : vector<256x32xf32>, vector<32x1024xf32>, vector<256x1024xf32> -> vector<256x1024xf32>
    %3 = vector.shape_cast %2 : vector<256x1024xf32> to vector<8x32x1024xf32>
    %c0_3 = arith.constant 0 : index
    %c0_4 = arith.constant 0 : index
    %4 = vector.load %arg2[%c0_3, %c0_4] : memref<32x1024xf32, #tpu.memory_space<vmem>>, vector<32x1024xf32>
    %5 = vector.shape_cast %4 : vector<32x1024xf32> to vector<1x32x1024xf32>
    %6 = vector.broadcast %5 : vector<1x32x1024xf32> to vector<8x32x1024xf32>
    %7 = arith.mulf %3, %6 : vector<8x32x1024xf32>
    %cst_5 = arith.constant dense<0.000000e+00> : vector<8x1024xf32>
    %8 = vector.multi_reduction <add>, %7, %cst_5 [1] : vector<8x32x1024xf32> to vector<8x1024xf32>
    %c0_6 = arith.constant 0 : index
    %c0_7 = arith.constant 0 : index
    %9 = vector.load %arg3[%c0_6, %c0_7] : memref<8x1024xf32, #tpu.memory_space<vmem>>, vector<8x1024xf32>
    tpu.vector_store %arg3[%c0_6, %c0_7], %8 {strides = array<i32>} : memref<8x1024xf32, #tpu.memory_space<vmem>>, vector<8x1024xf32>,
    return
  }
}

</mosaic_0001>

<llo_original>
// kernel: inverse_model_forward.1
$region0: #{inverse_model_forward.1}
  #allocation0 [shape = 'u32[]', space=smem, size = 0x4, offset = 0x4, fixed_abs, tag = 'smem constant byte address 0x4 - core index']
  #allocation1 [shape = 'u32[144,128]{1,0:T(1,128)}', space=vmem, size = 0x12000, scoped, tag = 'internal scratch']
  %s0 = inlined_call_operand.vmem [shape: f32[256,32], index: 0, kind: input, shape index: {}]
  %s1 = inlined_call_operand.vmem [shape: f32[32,1024], index: 1, kind: input, shape index: {}]
  %s2 = inlined_call_operand.vmem [shape: f32[32,1024], index: 2, kind: input, shape index: {}]
  %s3 = inlined_call_operand.vmem [shape: f32[8,1024], index: 3, kind: output, shape index: {}]
  %s4 = sld [smem:[#allocation0]]
  $region22: #{inverse_model_forward.1} parent=0
    _
  %s6 = ssub.s32 1, %s4
  %s7 = scalar_select 0, %s6, %s4
  // Predicated region
  $region2: #{inverse_model_forward.1} parent=0 // pred_check
    _
  $region3: #{inverse_model_forward.1} parent=0 // pred_check_branch
    %9 = sbr.rel (0) target = $region5
  $region4: #{inverse_model_forward.1} parent=0 // pred_region
    _
  $region5: #{inverse_model_forward.1} parent=0 // pred_fallthru
    _
  // Predicated region
  $region6: #{inverse_model_forward.1} parent=0 // pred_check
    _
  $region7: #{inverse_model_forward.1} parent=0 // pred_check_branch
    %11 = sbr.rel (0) target = $region9
  $region8: #{inverse_model_forward.1} parent=0 // pred_region
    _
  $region9: #{inverse_model_forward.1} parent=0 // pred_fallthru
    _
  // Predicated region
  $region10: #{inverse_model_forward.1} parent=0 // pred_check
    _
  $region11: #{inverse_model_forward.1} parent=0 // pred_check_branch
    %13 = sbr.rel (0) target = $region13
  $region12: #{inverse_model_forward.1} parent=0 // pred_region
    _
  $region13: #{inverse_model_forward.1} parent=0 // pred_fallthru
    _
  %v14 = vld [vmem:[%s0] sm:$0xff]
  %v15 = vld [vmem:[%s0 + $0x8] sm:$0xff]
  %v16 = vld [vmem:[%s0 + $0x10] sm:$0xff]
  %v17 = vld [vmem:[%s0 + $0x18] sm:$0xff]
  %v18 = vld [vmem:[%s0 + $0x20] sm:$0xff]
  %v19 = vld [vmem:[%s0 + $0x28] sm:$0xff]
  %v20 = vld [vmem:[%s0 + $0x30] sm:$0xff]
  %v21 = vld [vmem:[%s0 + $0x38] sm:$0xff]
  %v22 = vld [vmem:[%s0 + $0x40] sm:$0xff]
  %v23 = vld [vmem:[%s0 + $0x48] sm:$0xff]
  %v24 = vld [vmem:[%s0 + $0x50] sm:$0xff]
  %v25 = vld [vmem:[%s0 + $0x58] sm:$0xff]
  %v26 = vld [vmem:[%s0 + $0x60] sm:$0xff]
  %v27 = vld [vmem:[%s0 + $0x68] sm:$0xff]
  %v28 = vld [vmem:[%s0 + $0x70] sm:$0xff]
  %v29 = vld [vmem:[%s0 + $0x78] sm:$0xff]
  %v30 = vld [vmem:[%s0 + $0x80] sm:$0xff]
  %v31 = vld [vmem:[%s0 + $0x88] sm:$0xff]
  %v32 = vld [vmem:[%s0 + $0x90] sm:$0xff]
  %v33 = vld [vmem:[%s0 + $0x98] sm:$0xff]
  %v34 = vld [vmem:[%s0 + $0xa0] sm:$0xff]
  %v35 = vld [vmem:[%s0 + $0xa8] sm:$0xff]
  %v36 = vld [vmem:[%s0 + $0xb0] sm:$0xff]
  %v37 = vld [vmem:[%s0 + $0xb8] sm:$0xff]
  %v38 = vld [vmem:[%s0 + $0xc0] sm:$0xff]
  %v39 = vld [vmem:[%s0 + $0xc8] sm:$0xff]
  %v40 = vld [vmem:[%s0 + $0xd0] sm:$0xff]
  %v41 = vld [vmem:[%s0 + $0xd8] sm:$0xff]
  %v42 = vld [vmem:[%s0 + $0xe0] sm:$0xff]
  %v43 = vld [vmem:[%s0 + $0xe8] sm:$0xff]
  %v44 = vld [vmem:[%s0 + $0xf0] sm:$0xff]
  %v45 = vld [vmem:[%s0 + $0xf8] sm:$0xff]
  %v46 = vld [vmem:[%s1] sm:$0xff]
  %v47 = vld [vmem:[%s1 + $0x8] sm:$0xff]
  %v48 = vld [vmem:[%s1 + $0x10] sm:$0xff]
  %v49 = vld [vmem:[%s1 + $0x18] sm:$0xff]
  %v50 = vld [vmem:[%s1 + $0x20] sm:$0xff]
  %v51 = vld [vmem:[%s1 + $0x28] sm:$0xff]
  %v52 = vld [vmem:[%s1 + $0x30] sm:$0xff]
  %v53 = vld [vmem:[%s1 + $0x38] sm:$0xff]
  %v54 = vld [vmem:[%s1 + $0x40] sm:$0xff]
  %v55 = vld [vmem:[%s1 + $0x48] sm:$0xff]
  %v56 = vld [vmem:[%s1 + $0x50] sm:$0xff]
  %v57 = vld [vmem:[%s1 + $0x58] sm:$0xff]
  %v58 = vld [vmem:[%s1 + $0x60] sm:$0xff]
  %v59 = vld [vmem:[%s1 + $0x68] sm:$0xff]
  %v60 = vld [vmem:[%s1 + $0x70] sm:$0xff]
  %v61 = vld [vmem:[%s1 + $0x78] sm:$0xff]
  %v62 = vld [vmem:[%s1 + $0x80] sm:$0xff]
  %v63 = vld [vmem:[%s1 + $0x88] sm:$0xff]
  %v64 = vld [vmem:[%s1 + $0x90] sm:$0xff]
  %v65 = vld [vmem:[%s1 + $0x98] sm:$0xff]
  %v66 = vld [vmem:[%s1 + $0xa0] sm:$0xff]
  %v67 = vld [vmem:[%s1 + $0xa8] sm:$0xff]
  %v68 = vld [vmem:[%s1 + $0xb0] sm:$0xff]
  %v69 = vld [vmem:[%s1 + $0xb8] sm:$0xff]
  %v70 = vld [vmem:[%s1 + $0xc0] sm:$0xff]
  %v71 = vld [vmem:[%s1 + $0xc8] sm:$0xff]
  %v72 = vld [vmem:[%s1 + $0xd0] sm:$0xff]
  %v73 = vld [vmem:[%s1 + $0xd8] sm:$0xff]
  %v74 = vld [vmem:[%s1 + $0xe0] sm:$0xff]
  %v75 = vld [vmem:[%s1 + $0xe8] sm:$0xff]
  %v76 = vld [vmem:[%s1 + $0xf0] sm:$0xff]
  %v77 = vld [vmem:[%s1 + $0xf8] sm:$0xff]
  %vm78 = vcmask 261120
  %v80 = vsel %vm78, %v14, 0
  %v83 = vsel %vm78, %v15, 0
  %v86 = vsel %vm78, %v16, 0
  %v89 = vsel %vm78, %v17, 0
  %v92 = vsel %vm78, %v18, 0
  %v95 = vsel %vm78, %v19, 0
  %v98 = vsel %vm78, %v20, 0
  %v101 = vsel %vm78, %v21, 0
  %v104 = vsel %vm78, %v22, 0
  %v107 = vsel %vm78, %v23, 0
  %v110 = vsel %vm78, %v24, 0
  %v113 = vsel %vm78, %v25, 0
  %v116 = vsel %vm78, %v26, 0
  %v119 = vsel %vm78, %v27, 0
  %v122 = vsel %vm78, %v28, 0
  %v125 = vsel %vm78, %v29, 0
  %v128 = vsel %vm78, %v30, 0
  %v131 = vsel %vm78, %v31, 0
  %v134 = vsel %vm78, %v32, 0
  %v137 = vsel %vm78, %v33, 0
  %v140 = vsel %vm78, %v34, 0
  %v143 = vsel %vm78, %v35, 0
  %v146 = vsel %vm78, %v36, 0
  %v149 = vsel %vm78, %v37, 0
  %v152 = vsel %vm78, %v38, 0
  %v155 = vsel %vm78, %v39, 0
  %v158 = vsel %vm78, %v40, 0
  %v161 = vsel %vm78, %v41, 0
  %v164 = vsel %vm78, %v42, 0
  %v167 = vsel %vm78, %v43, 0
  %v170 = vsel %vm78, %v44, 0
  %v173 = vsel %vm78, %v45, 0
  %175 = vmatprep.subr.mxu0 0.0
  %176 = vmatpush1.msra.mxu0 0.0
  %177 = vmatprep.subr.mxu0 0.0
  %178 = vmatpush1.msra.mxu0 0.0
  %179 = vmatprep.subr.mxu0 0.0
  %180 = vmatpush1.msra.mxu0 0.0
  %181 = vmatprep.subr.mxu0 0.0
  %182 = vmatpush1.msra.mxu0 0.0
  %183 = vmatprep.subr.mxu0 0.0
  %184 = vmatpush1.msra.mxu0 0.0
  %185 = vmatprep.subr.mxu0 0.0
  %186 = vmatpush1.msra.mxu0 0.0
  %187 = vmatprep.subr.mxu0 0.0
  %188 = vmatpush1.msra.mxu0 0.0
  %189 = vmatprep.subr.mxu0 0.0
  %190 = vmatpush1.msra.mxu0 0.0
  %191 = vmatprep.subr.mxu0 0.0
  %192 = vmatpush1.msra.mxu0 0.0
  %193 = vmatprep.subr.mxu0 0.0
  %194 = vmatpush1.msra.mxu0 0.0
  %195 = vmatprep.subr.mxu0 0.0
  %196 = vmatpush1.msra.mxu0 0.0
  %197 = vmatprep.subr.mxu0 0.0
  %198 = vmatpush1.msra.mxu0 0.0
  %199 = vmatprep.subr.mxu0 %v71
  %200 = vmatpush1.msra.mxu0 %v70
  %201 = vmatprep.subr.mxu0 %v63
  %202 = vmatpush1.msra.mxu0 %v62
  %203 = vmatprep.subr.mxu0 %v55
  %204 = vmatpush1.msra.mxu0 %v54
  %205 = vmatprep.subr.mxu0 %v47
  %206 = vmatpush1.msra.mxu0 %v46
  %207 = vmatprep.subr.mxu0 0.0
  %208 = vmatpush2.msra.mxu0 0.0
  %209 = vmatprep.subr.mxu0 0.0
  %210 = vmatpush2.msra.mxu0 0.0
  %211 = vmatprep.subr.mxu0 0.0
  %212 = vmatpush2.msra.mxu0 0.0
  %213 = vmatprep.subr.mxu0 0.0
  %214 = vmatpush2.msra.mxu0 0.0
  %215 = vmatprep.subr.mxu0 0.0
  %216 = vmatpush2.msra.mxu0 0.0
  %217 = vmatprep.subr.mxu0 0.0
  %218 = vmatpush2.msra.mxu0 0.0
  %219 = vmatprep.subr.mxu0 0.0
  %220 = vmatpush2.msra.mxu0 0.0
  %221 = vmatprep.subr.mxu0 0.0
  %222 = vmatpush2.msra.mxu0 0.0
  %223 = vmatprep.subr.mxu0 0.0
  %224 = vmatpush2.msra.mxu0 0.0
  %225 = vmatprep.subr.mxu0 0.0
  %226 = vmatpush2.msra.mxu0 0.0
  %227 = vmatprep.subr.mxu0 0.0
  %228 = vmatpush2.msra.mxu0 0.0
  %229 = vmatprep.subr.mxu0 0.0
  %230 = vmatpush2.msra.mxu0 0.0
  %231 = vmatprep.subr.mxu0 0.0
  %232 = vmatpush2.msra.mxu0 0.0
  %233 = vmatprep.subr.mxu0 0.0
  %234 = vmatpush2.msra.mxu0 0.0
  %235 = vmatprep.subr.mxu0 0.0
  %236 = vmatpush2.msra.mxu0 0.0
  %237 = vmatprep.subr.mxu0 0.0
  %238 = vmatpush2.msra.mxu0 0.0
  %239 = vmatprep.mubr.f32.mxu0 0.0
  %240 = vmatmul.mubr.f32.gmra.mxu0 %v80
  %v241 = vpop.f32.mrf.mxu0
  %v242 = vadd.f32 0.0, %v241
  %v243 = vpop.f32.mrf.mxu0
  %v244 = vadd.f32 0.0, %v243
  %245 = vmatprep.mubr.f32.mxu0 0.0
  %246 = vmatmul.mubr.f32.gmra.mxu0 %v83
  %v247 = vpop.f32.mrf.mxu0
  %v248 = vadd.f32 0.0, %v247
  %v249 = vpop.f32.mrf.mxu0
  %v250 = vadd.f32 0.0, %v249
  %251 = vmatprep.mubr.f32.mxu0 0.0
  %252 = vmatmul.mubr.f32.gmra.mxu0 %v86
  %v253 = vpop.f32.mrf.mxu0
  %v254 = vadd.f32 0.0, %v253
  %v255 = vpop.f32.mrf.mxu0
  %v256 = vadd.f32 0.0, %v255
  %257 = vmatprep.mubr.f32.mxu0 0.0
  %258 = vmatmul.mubr.f32.gmra.mxu0 %v89
  %v259 = vpop.f32.mrf.mxu0
  %v260 = vadd.f32 0.0, %v259
  %v261 = vpop.f32.mrf.mxu0
  %v262 = vadd.f32 0.0, %v261
  %263 = vmatprep.mubr.f32.mxu0 0.0
  %264 = vmatmul.mubr.f32.gmra.mxu0 %v92
  %v265 = vpop.f32.mrf.mxu0
  %v266 = vadd.f32 0.0, %v265
  %v267 = vpop.f32.mrf.mxu0
  %v268 = vadd.f32 0.0, %v267
  %269 = vmatprep.mubr.f32.mxu0 0.0
  %270 = vmatmul.mubr.f32.gmra.mxu0 %v95
  %v271 = vpop.f32.mrf.mxu0
  %v272 = vadd.f32 0.0, %v271
  %v273 = vpop.f32.mrf.mxu0
  %v274 = vadd.f32 0.0, %v273
  %275 = vmatprep.mubr.f32.mxu0 0.0
  %276 = vmatmul.mubr.f32.gmra.mxu0 %v98
  %v277 = vpop.f32.mrf.mxu0
  %v278 = vadd.f32 0.0, %v277
  %v279 = vpop.f32.mrf.mxu0
  %v280 = vadd.f32 0.0, %v279
  %281 = vmatprep.mubr.f32.mxu0 0.0
  %282 = vmatmul.mubr.f32.gmra.mxu0 %v101
  %v283 = vpop.f32.mrf.mxu0
  %v284 = vadd.f32 0.0, %v283
  %v285 = vpop.f32.mrf.mxu0
  %v286 = vadd.f32 0.0, %v285
  %287 = vmatprep.mubr.f32.mxu0 0.0
  %288 = vmatmul.mubr.f32.gmra.mxu0 %v104
  %v289 = vpop.f32.mrf.mxu0
  %v290 = vadd.f32 0.0, %v289
  %v291 = vpop.f32.mrf.mxu0
  %v292 = vadd.f32 0.0, %v291
  %293 = vmatprep.mubr.f32.mxu0 0.0
  %294 = vmatmul.mubr.f32.gmra.mxu0 %v107
  %v295 = vpop.f32.mrf.mxu0
  %v296 = vadd.f32 0.0, %v295
  %v297 = vpop.f32.mrf.mxu0
  %v298 = vadd.f32 0.0, %v297
  %299 = vmatprep.mubr.f32.mxu0 0.0
  %300 = vmatmul.mubr.f32.gmra.mxu0 %v110
  %v301 = vpop.f32.mrf.mxu0
  %v302 = vadd.f32 0.0, %v301
  %v303 = vpop.f32.mrf.mxu0
  %v304 = vadd.f32 0.0, %v303
  %305 = vmatprep.mubr.f32.mxu0 0.0
  %306 = vmatmul.mubr.f32.gmra.mxu0 %v113
  %v307 = vpop.f32.mrf.mxu0
  %v308 = vadd.f32 0.0, %v307
  %v309 = vpop.f32.mrf.mxu0
  %v310 = vadd.f32 0.0, %v309
  %311 = vmatprep.mubr.f32.mxu0 0.0
  %312 = vmatmul.mubr.f32.gmra.mxu0 %v116
  %v313 = vpop.f32.mrf.mxu0
  %v314 = vadd.f32 0.0, %v313
  %v315 = vpop.f32.mrf.mxu0
  %v316 = vadd.f32 0.0, %v315
  %317 = vmatprep.mubr.f32.mxu0 0.0
  %318 = vmatmul.mubr.f32.gmra.mxu0 %v119
  %v319 = vpop.f32.mrf.mxu0
  %v320 = vadd.f32 0.0, %v319
  %v321 = vpop.f32.mrf.mxu0
  %v322 = vadd.f32 0.0, %v321
  %323 = vmatprep.mubr.f32.mxu0 0.0
  %324 = vmatmul.mubr.f32.gmra.mxu0 %v122
  %v325 = vpop.f32.mrf.mxu0
  %v326 = vadd.f32 0.0, %v325
  %v327 = vpop.f32.mrf.mxu0
  %v328 = vadd.f32 0.0, %v327
  %329 = vmatprep.mubr.f32.mxu0 0.0
  %330 = vmatmul.mubr.f32.gmra.mxu0 %v125
  %v331 = vpop.f32.mrf.mxu0
  %v332 = vadd.f32 0.0, %v331
  %v333 = vpop.f32.mrf.mxu0
  %v334 = vadd.f32 0.0, %v333
  %335 = vmatprep.mubr.f32.mxu0 0.0
  %336 = vmatmul.mubr.f32.gmra.mxu0 %v128
  %v337 = vpop.f32.mrf.mxu0
  %v338 = vadd.f32 0.0, %v337
  %v339 = vpop.f32.mrf.mxu0
  %v340 = vadd.f32 0.0, %v339
  %341 = vmatprep.mubr.f32.mxu0 0.0
  %342 = vmatmul.mubr.f32.gmra.mxu0 %v131
  %v343 = vpop.f32.mrf.mxu0
  %v344 = vadd.f32 0.0, %v343
  %v345 = vpop.f32.mrf.mxu0
  %v346 = vadd.f32 0.0, %v345
  %347 = vmatprep.mubr.f32.mxu0 0.0
  %348 = vmatmul.mubr.f32.gmra.mxu0 %v134
  %v349 = vpop.f32.mrf.mxu0
  %v350 = vadd.f32 0.0, %v349
  %v351 = vpop.f32.mrf.mxu0
  %v352 = vadd.f32 0.0, %v351
  %353 = vmatprep.mubr.f32.mxu0 0.0
  %354 = vmatmul.mubr.f32.gmra.mxu0 %v137
  %v355 = vpop.f32.mrf.mxu0
  %v356 = vadd.f32 0.0, %v355
  %v357 = vpop.f32.mrf.mxu0
  %v358 = vadd.f32 0.0, %v357
  %359 = vmatprep.mubr.f32.mxu0 0.0
  %360 = vmatmul.mubr.f32.gmra.mxu0 %v140
  %v361 = vpop.f32.mrf.mxu0
  %v362 = vadd.f32 0.0, %v361
  %v363 = vpop.f32.mrf.mxu0
  %v364 = vadd.f32 0.0, %v363
  %365 = vmatprep.mubr.f32.mxu0 0.0
  %366 = vmatmul.mubr.f32.gmra.mxu0 %v143
  %v367 = vpop.f32.mrf.mxu0
  %v368 = vadd.f32 0.0, %v367
  %v369 = vpop.f32.mrf.mxu0
  %v370 = vadd.f32 0.0, %v369
  %371 = vmatprep.mubr.f32.mxu0 0.0
  %372 = vmatmul.mubr.f32.gmra.mxu0 %v146
  %v373 = vpop.f32.mrf.mxu0
  %v374 = vadd.f32 0.0, %v373
  %v375 = vpop.f32.mrf.mxu0
  %v376 = vadd.f32 0.0, %v375
  %377 = vmatprep.mubr.f32.mxu0 0.0
  %378 = vmatmul.mubr.f32.gmra.mxu0 %v149
  %v379 = vpop.f32.mrf.mxu0
  %v380 = vadd.f32 0.0, %v379
  %v381 = vpop.f32.mrf.mxu0
  %v382 = vadd.f32 0.0, %v381
  %383 = vmatprep.mubr.f32.mxu0 0.0
  %384 = vmatmul.mubr.f32.gmra.mxu0 %v152
  %v385 = vpop.f32.mrf.mxu0
  %v386 = vadd.f32 0.0, %v385
  %v387 = vpop.f32.mrf.mxu0
  %v388 = vadd.f32 0.0, %v387
  %389 = vmatprep.mubr.f32.mxu0 0.0
  %390 = vmatmul.mubr.f32.gmra.mxu0 %v155
  %v391 = vpop.f32.mrf.mxu0
  %v392 = vadd.f32 0.0, %v391
  %v393 = vpop.f32.mrf.mxu0
  %v394 = vadd.f32 0.0, %v393
  %395 = vmatprep.mubr.f32.mxu0 0.0
  %396 = vmatmul.mubr.f32.gmra.mxu0 %v158
  %v397 = vpop.f32.mrf.mxu0
  %v398 = vadd.f32 0.0, %v397
  %v399 = vpop.f32.mrf.mxu0
  %v400 = vadd.f32 0.0, %v399
  %401 = vmatprep.mubr.f32.mxu0 0.0
  %402 = vmatmul.mubr.f32.gmra.mxu0 %v161
  %v403 = vpop.f32.mrf.mxu0
  %v404 = vadd.f32 0.0, %v403
  %v405 = vpop.f32.mrf.mxu0
  %v406 = vadd.f32 0.0, %v405
  %407 = vmatprep.mubr.f32.mxu0 0.0
  %408 = vmatmul.mubr.f32.gmra.mxu0 %v164
  %v409 = vpop.f32.mrf.mxu0
  %v410 = vadd.f32 0.0, %v409
  %v411 = vpop.f32.mrf.mxu0
  %v412 = vadd.f32 0.0, %v411
  %413 = vmatprep.mubr.f32.mxu0 0.0
  %414 = vmatmul.mubr.f32.gmra.mxu0 %v167
  %v415 = vpop.f32.mrf.mxu0
  %v416 = vadd.f32 0.0, %v415
  %v417 = vpop.f32.mrf.mxu0
  %v418 = vadd.f32 0.0, %v417
  %419 = vmatprep.mubr.f32.mxu0 0.0
  %420 = vmatmul.mubr.f32.gmra.mxu0 %v170
  %v421 = vpop.f32.mrf.mxu0
  %v422 = vadd.f32 0.0, %v421
  %v423 = vpop.f32.mrf.mxu0
  %v424 = vadd.f32 0.0, %v423
  %425 = vmatprep.mubr.f32.mxu0 0.0
  %426 = vmatmul.mubr.f32.gmra.mxu0 %v173
  %v427 = vpop.f32.mrf.mxu0
  %v428 = vadd.f32 0.0, %v427
  %v429 = vpop.f32.mrf.mxu0
  %v430 = vadd.f32 0.0, %v429
  %431 = vdwg.mxu0
  %432 = vmatprep.subr.mxu0 0.0
  %433 = vmatpush1.msra.mxu0 0.0
  %434 = vmatprep.subr.mxu0 0.0
  %435 = vmatpush1.msra.mxu0 0.0
  %436 = vmatprep.subr.mxu0 0.0
  %437 = vmatpush1.msra.mxu0 0.0
  %438 = vmatprep.subr.mxu0 0.0
  %439 = vmatpush1.msra.mxu0 0.0
  %440 = vmatprep.subr.mxu0 0.0
  %441 = vmatpush1.msra.mxu0 0.0
  %442 = vmatprep.subr.mxu0 0.0
  %443 = vmatpush1.msra.mxu0 0.0
  %444 = vmatprep.subr.mxu0 0.0
  %445 = vmatpush1.msra.mxu0 0.0
  %446 = vmatprep.subr.mxu0 0.0
  %447 = vmatpush1.msra.mxu0 0.0
  %448 = vmatprep.subr.mxu0 0.0
  %449 = vmatpush1.msra.mxu0 0.0
  %450 = vmatprep.subr.mxu0 0.0
  %451 = vmatpush1.msra.mxu0 0.0
  %452 = vmatprep.subr.mxu0 0.0
  %453 = vmatpush1.msra.mxu0 0.0
  %454 = vmatprep.subr.mxu0 0.0
  %455 = vmatpush1.msra.mxu0 0.0
  %456 = vmatprep.subr.mxu0 %v73
  %457 = vmatpush1.msra.mxu0 %v72
  %458 = vmatprep.subr.mxu0 %v65
  %459 = vmatpush1.msra.mxu0 %v64
  %460 = vmatprep.subr.mxu0 %v57
  %461 = vmatpush1.msra.mxu0 %v56
  %462 = vmatprep.subr.mxu0 %v49
  %463 = vmatpush1.msra.mxu0 %v48
  %464 = vmatprep.subr.mxu0 0.0
  %465 = vmatpush2.msra.mxu0 0.0
  %466 = vmatprep.subr.mxu0 0.0
  %467 = vmatpush2.msra.mxu0 0.0
  %468 = vmatprep.subr.mxu0 0.0
  %469 = vmatpush2.msra.mxu0 0.0
  %470 = vmatprep.subr.mxu0 0.0
  %471 = vmatpush2.msra.mxu0 0.0
  %472 = vmatprep.subr.mxu0 0.0
  %473 = vmatpush2.msra.mxu0 0.0
  %474 = vmatprep.subr.mxu0 0.0
  %475 = vmatpush2.msra.mxu0 0.0
  %476 = vmatprep.subr.mxu0 0.0
  %477 = vmatpush2.msra.mxu0 0.0
  %478 = vmatprep.subr.mxu0 0.0
  %479 = vmatpush2.msra.mxu0 0.0
  %480 = vmatprep.subr.mxu0 0.0
  %481 = vmatpush2.msra.mxu0 0.0
  %482 = vmatprep.subr.mxu0 0.0
  %483 = vmatpush2.msra.mxu0 0.0
  %484 = vmatprep.subr.mxu0 0.0
  %485 = vmatpush2.msra.mxu0 0.0
  %486 = vmatprep.subr.mxu0 0.0
  %487 = vmatpush2.msra.mxu0 0.0
  %488 = vmatprep.subr.mxu0 0.0
  %489 = vmatpush2.msra.mxu0 0.0
  %490 = vmatprep.subr.mxu0 0.0
  %491 = vmatpush2.msra.mxu0 0.0
  %492 = vmatprep.subr.mxu0 0.0
  %493 = vmatpush2.msra.mxu0 0.0
  %494 = vmatprep.subr.mxu0 0.0
  %495 = vmatpush2.msra.mxu0 0.0
  %496 = vmatprep.mubr.f32.mxu0 0.0
  %497 = vmatmul.mubr.f32.gmra.mxu0 %v80
  %v498 = vpop.f32.mrf.mxu0
  %v499 = vadd.f32 0.0, %v498
  %v500 = vpop.f32.mrf.mxu0
  %v501 = vadd.f32 0.0, %v500
  %502 = vmatprep.mubr.f32.mxu0 0.0
  %503 = vmatmul.mubr.f32.gmra.mxu0 %v83
  %v504 = vpop.f32.mrf.mxu0
  %v505 = vadd.f32 0.0, %v504
  %v506 = vpop.f32.mrf.mxu0
  %v507 = vadd.f32 0.0, %v506
  %508 = vmatprep.mubr.f32.mxu0 0.0
  %509 = vmatmul.mubr.f32.gmra.mxu0 %v86
  %v510 = vpop.f32.mrf.mxu0
  %v511 = vadd.f32 0.0, %v510
  %v512 = vpop.f32.mrf.mxu0
  %v513 = vadd.f32 0.0, %v512
  %514 = vmatprep.mubr.f32.mxu0 0.0
  %515 = vmatmul.mubr.f32.gmra.mxu0 %v89
  %v516 = vpop.f32.mrf.mxu0
  %v517 = vadd.f32 0.0, %v516
  %v518 = vpop.f32.mrf.mxu0
  %v519 = vadd.f32 0.0, %v518
  %520 = vmatprep.mubr.f32.mxu0 0.0
  %521 = vmatmul.mubr.f32.gmra.mxu0 %v92
  %v522 = vpop.f32.mrf.mxu0
  %v523 = vadd.f32 0.0, %v522
  %v524 = vpop.f32.mrf.mxu0
  %v525 = vadd.f32 0.0, %v524
  %526 = vmatprep.mubr.f32.mxu0 0.0
  %527 = vmatmul.mubr.f32.gmra.mxu0 %v95
  %v528 = vpop.f32.mrf.mxu0
  %v529 = vadd.f32 0.0, %v528
  %v530 = vpop.f32.mrf.mxu0
  %v531 = vadd.f32 0.0, %v530
  %532 = vmatprep.mubr.f32.mxu0 0.0
  %533 = vmatmul.mubr.f32.gmra.mxu0 %v98
  %v534 = vpop.f32.mrf.mxu0
  %v535 = vadd.f32 0.0, %v534
  %v536 = vpop.f32.mrf.mxu0
  %v537 = vadd.f32 0.0, %v536
  %538 = vmatprep.mubr.f32.mxu0 0.0
  %539 = vmatmul.mubr.f32.gmra.mxu0 %v101
  %v540 = vpop.f32.mrf.mxu0
  %v541 = vadd.f32 0.0, %v540
  %v542 = vpop.f32.mrf.mxu0
  %v543 = vadd.f32 0.0, %v542
  %544 = vmatprep.mubr.f32.mxu0 0.0
  %545 = vmatmul.mubr.f32.gmra.mxu0 %v104
  %v546 = vpop.f32.mrf.mxu0
  %v547 = vadd.f32 0.0, %v546
  %v548 = vpop.f32.mrf.mxu0
  %v549 = vadd.f32 0.0, %v548
  %550 = vmatprep.mubr.f32.mxu0 0.0
  %551 = vmatmul.mubr.f32.gmra.mxu0 %v107
  %v552 = vpop.f32.mrf.mxu0
  %v553 = vadd.f32 0.0, %v552
  %v554 = vpop.f32.mrf.mxu0
  %v555 = vadd.f32 0.0, %v554
  %556 = vmatprep.mubr.f32.mxu0 0.0
  %557 = vmatmul.mubr.f32.gmra.mxu0 %v110
  %v558 = vpop.f32.mrf.mxu0
  %v559 = vadd.f32 0.0, %v558
  %v560 = vpop.f32.mrf.mxu0
  %v561 = vadd.f32 0.0, %v560
  %562 = vmatprep.mubr.f32.mxu0 0.0
  %563 = vmatmul.mubr.f32.gmra.mxu0 %v113
  %v564 = vpop.f32.mrf.mxu0
  %v565 = vadd.f32 0.0, %v564
  %v566 = vpop.f32.mrf.mxu0
  %v567 = vadd.f32 0.0, %v566
  %568 = vmatprep.mubr.f32.mxu0 0.0
  %569 = vmatmul.mubr.f32.gmra.mxu0 %v116
  %v570 = vpop.f32.mrf.mxu0
  %v571 = vadd.f32 0.0, %v570
  %v572 = vpop.f32.mrf.mxu0
  %v573 = vadd.f32 0.0, %v572
  %574 = vmatprep.mubr.f32.mxu0 0.0
  %575 = vmatmul.mubr.f32.gmra.mxu0 %v119
  %v576 = vpop.f32.mrf.mxu0
  %v577 = vadd.f32 0.0, %v576
  %v578 = vpop.f32.mrf.mxu0
  %v579 = vadd.f32 0.0, %v578
  %580 = vmatprep.mubr.f32.mxu0 0.0
  %581 = vmatmul.mubr.f32.gmra.mxu0 %v122
  %v582 = vpop.f32.mrf.mxu0
  %v583 = vadd.f32 0.0, %v582
  %v584 = vpop.f32.mrf.mxu0
  %v585 = vadd.f32 0.0, %v584
  %586 = vmatprep.mubr.f32.mxu0 0.0
  %587 = vmatmul.mubr.f32.gmra.mxu0 %v125
  %v588 = vpop.f32.mrf.mxu0
  %v589 = vadd.f32 0.0, %v588
  %v590 = vpop.f32.mrf.mxu0
  %v591 = vadd.f32 0.0, %v590
  %592 = vmatprep.mubr.f32.mxu0 0.0
  %593 = vmatmul.mubr.f32.gmra.mxu0 %v128
  %v594 = vpop.f32.mrf.mxu0
  %v595 = vadd.f32 0.0, %v594
  %v596 = vpop.f32.mrf.mxu0
  %v597 = vadd.f32 0.0, %v596
  %598 = vmatprep.mubr.f32.mxu0 0.0
  %599 = vmatmul.mubr.f32.gmra.mxu0 %v131
  %v600 = vpop.f32.mrf.mxu0
  %v601 = vadd.f32 0.0, %v600
  %v602 = vpop.f32.mrf.mxu0
  %v603 = vadd.f32 0.0, %v602
  %604 = vmatprep.mubr.f32.mxu0 0.0
  %605 = vmatmul.mubr.f32.gmra.mxu0 %v134
  %v606 = vpop.f32.mrf.mxu0
  %v607 = vadd.f32 0.0, %v606
  %v608 = vpop.f32.mrf.mxu0
  %v609 = vadd.f32 0.0, %v608
  %610 = vmatprep.mubr.f32.mxu0 0.0
  %611 = vmatmul.mubr.f32.gmra.mxu0 %v137
  %v612 = vpop.f32.mrf.mxu0
  %v613 = vadd.f32 0.0, %v612
  %v614 = vpop.f32.mrf.mxu0
  %v615 = vadd.f32 0.0, %v614
  %616 = vmatprep.mubr.f32.mxu0 0.0
  %617 = vmatmul.mubr.f32.gmra.mxu0 %v140
  %v618 = vpop.f32.mrf.mxu0
  %v619 = vadd.f32 0.0, %v618
  %v620 = vpop.f32.mrf.mxu0
  %v621 = vadd.f32 0.0, %v620
  %622 = vmatprep.mubr.f32.mxu0 0.0
  %623 = vmatmul.mubr.f32.gmra.mxu0 %v143
  %v624 = vpop.f32.mrf.mxu0
  %v625 = vadd.f32 0.0, %v624
  %v626 = vpop.f32.mrf.mxu0
  %v627 = vadd.f32 0.0, %v626
  %628 = vmatprep.mubr.f32.mxu0 0.0
  %629 = vmatmul.mubr.f32.gmra.mxu0 %v146
  %v630 = vpop.f32.mrf.mxu0
  %v631 = vadd.f32 0.0, %v630
  %v632 = vpop.f32.mrf.mxu0
  %v633 = vadd.f32 0.0, %v632
  %634 = vmatprep.mubr.f32.mxu0 0.0
  %635 = vmatmul.mubr.f32.gmra.mxu0 %v149
  %v636 = vpop.f32.mrf.mxu0
  %v637 = vadd.f32 0.0, %v636
  %v638 = vpop.f32.mrf.mxu0
  %v639 = vadd.f32 0.0, %v638
  %640 = vmatprep.mubr.f32.mxu0 0.0
  %641 = vmatmul.mubr.f32.gmra.mxu0 %v152
  %v642 = vpop.f32.mrf.mxu0
  %v643 = vadd.f32 0.0, %v642
  %v644 = vpop.f32.mrf.mxu0
  %v645 = vadd.f32 0.0, %v644
  %646 = vmatprep.mubr.f32.mxu0 0.0
  %647 = vmatmul.mubr.f32.gmra.mxu0 %v155
  %v648 = vpop.f32.mrf.mxu0
  %v649 = vadd.f32 0.0, %v648
  %v650 = vpop.f32.mrf.mxu0
  %v651 = vadd.f32 0.0, %v650
  %652 = vmatprep.mubr.f32.mxu0 0.0
  %653 = vmatmul.mubr.f32.gmra.mxu0 %v158
  %v654 = vpop.f32.mrf.mxu0
  %v655 = vadd.f32 0.0, %v654
  %v656 = vpop.f32.mrf.mxu0
  %v657 = vadd.f32 0.0, %v656
  %658 = vmatprep.mubr.f32.mxu0 0.0
  %659 = vmatmul.mubr.f32.gmra.mxu0 %v161
  %v660 = vpop.f32.mrf.mxu0
  %v661 = vadd.f32 0.0, %v660
  %v662 = vpop.f32.mrf.mxu0
  %v663 = vadd.f32 0.0, %v662
  %664 = vmatprep.mubr.f32.mxu0 0.0
  %665 = vmatmul.mubr.f32.gmra.mxu0 %v164
  %v666 = vpop.f32.mrf.mxu0
  %v667 = vadd.f32 0.0, %v666
  %v668 = vpop.f32.mrf.mxu0
  %v669 = vadd.f32 0.0, %v668
  %670 = vmatprep.mubr.f32.mxu0 0.0
  %671 = vmatmul.mubr.f32.gmra.mxu0 %v167
  %v672 = vpop.f32.mrf.mxu0
  %v673 = vadd.f32 0.0, %v672
  %v674 = vpop.f32.mrf.mxu0
  %v675 = vadd.f32 0.0, %v674
  %676 = vmatprep.mubr.f32.mxu0 0.0
  %677 = vmatmul.mubr.f32.gmra.mxu0 %v170
  %v678 = vpop.f32.mrf.mxu0
  %v679 = vadd.f32 0.0, %v678
  %v680 = vpop.f32.mrf.mxu0
  %v681 = vadd.f32 0.0, %v680
  %682 = vmatprep.mubr.f32.mxu0 0.0
  %683 = vmatmul.mubr.f32.gmra.mxu0 %v173
  %v684 = vpop.f32.mrf.mxu0
  %v685 = vadd.f32 0.0, %v684
  %v686 = vpop.f32.mrf.mxu0
  %v687 = vadd.f32 0.0, %v686
  %688 = vdwg.mxu0
  %689 = vmatprep.subr.mxu0 0.0
  %690 = vmatpush1.msra.mxu0 0.0
  %691 = vmatprep.subr.mxu0 0.0
  %692 = vmatpush1.msra.mxu0 0.0
  %693 = vmatprep.subr.mxu0 0.0
  %694 = vmatpush1.msra.mxu0 0.0
  %695 = vmatprep.subr.mxu0 0.0
  %696 = vmatpush1.msra.mxu0 0.0
  %697 = vmatprep.subr.mxu0 0.0
  %698 = vmatpush1.msra.mxu0 0.0
  %699 = vmatprep.subr.mxu0 0.0
  %700 = vmatpush1.msra.mxu0 0.0
  %701 = vmatprep.subr.mxu0 0.0
  %702 = vmatpush1.msra.mxu0 0.0
  %703 = vmatprep.subr.mxu0 0.0
  %704 = vmatpush1.msra.mxu0 0.0
  %705 = vmatprep.subr.mxu0 0.0
  %706 = vmatpush1.msra.mxu0 0.0
  %707 = vmatprep.subr.mxu0 0.0
  %708 = vmatpush1.msra.mxu0 0.0
  %709 = vmatprep.subr.mxu0 0.0
  %710 = vmatpush1.msra.mxu0 0.0
  %711 = vmatprep.subr.mxu0 0.0
  %712 = vmatpush1.msra.mxu0 0.0
  %713 = vmatprep.subr.mxu0 %v75
  %714 = vmatpush1.msra.mxu0 %v74
  %715 = vmatprep.subr.mxu0 %v67
  %716 = vmatpush1.msra.mxu0 %v66
  %717 = vmatprep.subr.mxu0 %v59
  %718 = vmatpush1.msra.mxu0 %v58
  %719 = vmatprep.subr.mxu0 %v51
  %720 = vmatpush1.msra.mxu0 %v50
  %721 = vmatprep.subr.mxu0 0.0
  %722 = vmatpush2.msra.mxu0 0.0
  %723 = vmatprep.subr.mxu0 0.0
  %724 = vmatpush2.msra.mxu0 0.0
  %725 = vmatprep.subr.mxu0 0.0
  %726 = vmatpush2.msra.mxu0 0.0
  %727 = vmatprep.subr.mxu0 0.0
  %728 = vmatpush2.msra.mxu0 0.0
  %729 = vmatprep.subr.mxu0 0.0
  %730 = vmatpush2.msra.mxu0 0.0
  %731 = vmatprep.subr.mxu0 0.0
  %732 = vmatpush2.msra.mxu0 0.0
  %733 = vmatprep.subr.mxu0 0.0
  %734 = vmatpush2.msra.mxu0 0.0
  %735 = vmatprep.subr.mxu0 0.0
  %736 = vmatpush2.msra.mxu0 0.0
  %737 = vmatprep.subr.mxu0 0.0
  %738 = vmatpush2.msra.mxu0 0.0
  %739 = vmatprep.subr.mxu0 0.0
  %740 = vmatpush2.msra.mxu0 0.0
  %741 = vmatprep.subr.mxu0 0.0
  %742 = vmatpush2.msra.mxu0 0.0
  %743 = vmatprep.subr.mxu0 0.0
  %744 = vmatpush2.msra.mxu0 0.0
  %745 = vmatprep.subr.mxu0 0.0
  %746 = vmatpush2.msra.mxu0 0.0
  %747 = vmatprep.subr.mxu0 0.0
  %748 = vmatpush2.msra.mxu0 0.0
  %749 = vmatprep.subr.mxu0 0.0
  %750 = vmatpush2.msra.mxu0 0.0
  %751 = vmatprep.subr.mxu0 0.0
  %752 = vmatpush2.msra.mxu0 0.0
  %753 = vmatprep.mubr.f32.mxu0 0.0
  %754 = vmatmul.mubr.f32.gmra.mxu0 %v80
  %v755 = vpop.f32.mrf.mxu0
  %v756 = vadd.f32 0.0, %v755
  %v757 = vpop.f32.mrf.mxu0
  %v758 = vadd.f32 0.0, %v757
  %759 = vmatprep.mubr.f32.mxu0 0.0
  %760 = vmatmul.mubr.f32.gmra.mxu0 %v83
  %v761 = vpop.f32.mrf.mxu0
  %v762 = vadd.f32 0.0, %v761
  %v763 = vpop.f32.mrf.mxu0
  %v764 = vadd.f32 0.0, %v763
  %765 = vmatprep.mubr.f32.mxu0 0.0
  %766 = vmatmul.mubr.f32.gmra.mxu0 %v86
  %v767 = vpop.f32.mrf.mxu0
  %v768 = vadd.f32 0.0, %v767
  %v769 = vpop.f32.mrf.mxu0
  %v770 = vadd.f32 0.0, %v769
  %771 = vmatprep.mubr.f32.mxu0 0.0
  %772 = vmatmul.mubr.f32.gmra.mxu0 %v89
  %v773 = vpop.f32.mrf.mxu0
  %v774 = vadd.f32 0.0, %v773
  %v775 = vpop.f32.mrf.mxu0
  %v776 = vadd.f32 0.0, %v775
  %777 = vmatprep.mubr.f32.mxu0 0.0
  %778 = vmatmul.mubr.f32.gmra.mxu0 %v92
  %v779 = vpop.f32.mrf.mxu0
  %v780 = vadd.f32 0.0, %v779
  %v781 = vpop.f32.mrf.mxu0
  %v782 = vadd.f32 0.0, %v781
  %783 = vmatprep.mubr.f32.mxu0 0.0
  %784 = vmatmul.mubr.f32.gmra.mxu0 %v95
  %v785 = vpop.f32.mrf.mxu0
  %v786 = vadd.f32 0.0, %v785
  %v787 = vpop.f32.mrf.mxu0
  %v788 = vadd.f32 0.0, %v787
  %789 = vmatprep.mubr.f32.mxu0 0.0
  %790 = vmatmul.mubr.f32.gmra.mxu0 %v98
  %v791 = vpop.f32.mrf.mxu0
  %v792 = vadd.f32 0.0, %v791
  %v793 = vpop.f32.mrf.mxu0
  %v794 = vadd.f32 0.0, %v793
  %795 = vmatprep.mubr.f32.mxu0 0.0
  %796 = vmatmul.mubr.f32.gmra.mxu0 %v101
  %v797 = vpop.f32.mrf.mxu0
  %v798 = vadd.f32 0.0, %v797
  %v799 = vpop.f32.mrf.mxu0
  %v800 = vadd.f32 0.0, %v799
  %801 = vmatprep.mubr.f32.mxu0 0.0
  %802 = vmatmul.mubr.f32.gmra.mxu0 %v104
  %v803 = vpop.f32.mrf.mxu0
  %v804 = vadd.f32 0.0, %v803
  %v805 = vpop.f32.mrf.mxu0
  %v806 = vadd.f32 0.0, %v805
  %807 = vmatprep.mubr.f32.mxu0 0.0
  %808 = vmatmul.mubr.f32.gmra.mxu0 %v107
  %v809 = vpop.f32.mrf.mxu0
  %v810 = vadd.f32 0.0, %v809
  %v811 = vpop.f32.mrf.mxu0
  %v812 = vadd.f32 0.0, %v811
  %813 = vmatprep.mubr.f32.mxu0 0.0
  %814 = vmatmul.mubr.f32.gmra.mxu0 %v110
  %v815 = vpop.f32.mrf.mxu0
  %v816 = vadd.f32 0.0, %v815
  %v817 = vpop.f32.mrf.mxu0
  %v818 = vadd.f32 0.0, %v817
  %819 = vmatprep.mubr.f32.mxu0 0.0
  %820 = vmatmul.mubr.f32.gmra.mxu0 %v113
  %v821 = vpop.f32.mrf.mxu0
  %v822 = vadd.f32 0.0, %v821
  %v823 = vpop.f32.mrf.mxu0
  %v824 = vadd.f32 0.0, %v823
  %825 = vmatprep.mubr.f32.mxu0 0.0
  %826 = vmatmul.mubr.f32.gmra.mxu0 %v116
  %v827 = vpop.f32.mrf.mxu0
  %v828 = vadd.f32 0.0, %v827
  %v829 = vpop.f32.mrf.mxu0
  %v830 = vadd.f32 0.0, %v829
  %831 = vmatprep.mubr.f32.mxu0 0.0
  %832 = vmatmul.mubr.f32.gmra.mxu0 %v119
  %v833 = vpop.f32.mrf.mxu0
  %v834 = vadd.f32 0.0, %v833
  %v835 = vpop.f32.mrf.mxu0
  %v836 = vadd.f32 0.0, %v835
  %837 = vmatprep.mubr.f32.mxu0 0.0
  %838 = vmatmul.mubr.f32.gmra.mxu0 %v122
  %v839 = vpop.f32.mrf.mxu0
  %v840 = vadd.f32 0.0, %v839
  %v841 = vpop.f32.mrf.mxu0
  %v842 = vadd.f32 0.0, %v841
  %843 = vmatprep.mubr.f32.mxu0 0.0
  %844 = vmatmul.mubr.f32.gmra.mxu0 %v125
  %v845 = vpop.f32.mrf.mxu0
  %v846 = vadd.f32 0.0, %v845
  %v847 = vpop.f32.mrf.mxu0
  %v848 = vadd.f32 0.0, %v847
  %849 = vmatprep.mubr.f32.mxu0 0.0
  %850 = vmatmul.mubr.f32.gmra.mxu0 %v128
  %v851 = vpop.f32.mrf.mxu0
  %v852 = vadd.f32 0.0, %v851
  %v853 = vpop.f32.mrf.mxu0
  %v854 = vadd.f32 0.0, %v853
  %855 = vmatprep.mubr.f32.mxu0 0.0
  %856 = vmatmul.mubr.f32.gmra.mxu0 %v131
  %v857 = vpop.f32.mrf.mxu0
  %v858 = vadd.f32 0.0, %v857
  %v859 = vpop.f32.mrf.mxu0
  %v860 = vadd.f32 0.0, %v859
  %861 = vmatprep.mubr.f32.mxu0 0.0
  %862 = vmatmul.mubr.f32.gmra.mxu0 %v134
  %v863 = vpop.f32.mrf.mxu0
  %v864 = vadd.f32 0.0, %v863
  %v865 = vpop.f32.mrf.mxu0
  %v866 = vadd.f32 0.0, %v865
  %867 = vmatprep.mubr.f32.mxu0 0.0
  %868 = vmatmul.mubr.f32.gmra.mxu0 %v137
  %v869 = vpop.f32.mrf.mxu0
  %v870 = vadd.f32 0.0, %v869
  %v871 = vpop.f32.mrf.mxu0
  %v872 = vadd.f32 0.0, %v871
  %873 = vmatprep.mubr.f32.mxu0 0.0
  %874 = vmatmul.mubr.f32.gmra.mxu0 %v140
  %v875 = vpop.f32.mrf.mxu0
  %v876 = vadd.f32 0.0, %v875
  %v877 = vpop.f32.mrf.mxu0
  %v878 = vadd.f32 0.0, %v877
  %879 = vmatprep.mubr.f32.mxu0 0.0
  %880 = vmatmul.mubr.f32.gmra.mxu0 %v143
  %v881 = vpop.f32.mrf.mxu0
  %v882 = vadd.f32 0.0, %v881
  %v883 = vpop.f32.mrf.mxu0
  %v884 = vadd.f32 0.0, %v883
  %885 = vmatprep.mubr.f32.mxu0 0.0
  %886 = vmatmul.mubr.f32.gmra.mxu0 %v146
  %v887 = vpop.f32.mrf.mxu0
  %v888 = vadd.f32 0.0, %v887
  %v889 = vpop.f32.mrf.mxu0
  %v890 = vadd.f32 0.0, %v889
  %891 = vmatprep.mubr.f32.mxu0 0.0
  %892 = vmatmul.mubr.f32.gmra.mxu0 %v149
  %v893 = vpop.f32.mrf.mxu0
  %v894 = vadd.f32 0.0, %v893
  %v895 = vpop.f32.mrf.mxu0
  %v896 = vadd.f32 0.0, %v895
  %897 = vmatprep.mubr.f32.mxu0 0.0
  %898 = vmatmul.mubr.f32.gmra.mxu0 %v152
  %v899 = vpop.f32.mrf.mxu0
  %v900 = vadd.f32 0.0, %v899
  %v901 = vpop.f32.mrf.mxu0
  %v902 = vadd.f32 0.0, %v901
  %903 = vmatprep.mubr.f32.mxu0 0.0
  %904 = vmatmul.mubr.f32.gmra.mxu0 %v155
  %v905 = vpop.f32.mrf.mxu0
  %v906 = vadd.f32 0.0, %v905
  %v907 = vpop.f32.mrf.mxu0
  %v908 = vadd.f32 0.0, %v907
  %909 = vmatprep.mubr.f32.mxu0 0.0
  %910 = vmatmul.mubr.f32.gmra.mxu0 %v158
  %v911 = vpop.f32.mrf.mxu0
  %v912 = vadd.f32 0.0, %v911
  %v913 = vpop.f32.mrf.mxu0
  %v914 = vadd.f32 0.0, %v913
  %915 = vmatprep.mubr.f32.mxu0 0.0
  %916 = vmatmul.mubr.f32.gmra.mxu0 %v161
  %v917 = vpop.f32.mrf.mxu0
  %v918 = vadd.f32 0.0, %v917
  %v919 = vpop.f32.mrf.mxu0
  %v920 = vadd.f32 0.0, %v919
  %921 = vmatprep.mubr.f32.mxu0 0.0
  %922 = vmatmul.mubr.f32.gmra.mxu0 %v164
  %v923 = vpop.f32.mrf.mxu0
  %v924 = vadd.f32 0.0, %v923
  %v925 = vpop.f32.mrf.mxu0
  %v926 = vadd.f32 0.0, %v925
  %927 = vmatprep.mubr.f32.mxu0 0.0
  %928 = vmatmul.mubr.f32.gmra.mxu0 %v167
  %v929 = vpop.f32.mrf.mxu0
  %v930 = vadd.f32 0.0, %v929
  %v931 = vpop.f32.mrf.mxu0
  %v932 = vadd.f32 0.0, %v931
  %933 = vmatprep.mubr.f32.mxu0 0.0
  %934 = vmatmul.mubr.f32.gmra.mxu0 %v170
  %v935 = vpop.f32.mrf.mxu0
  %v936 = vadd.f32 0.0, %v935
  %v937 = vpop.f32.mrf.mxu0
  %v938 = vadd.f32 0.0, %v937
  %939 = vmatprep.mubr.f32.mxu0 0.0
  %940 = vmatmul.mubr.f32.gmra.mxu0 %v173
  %v941 = vpop.f32.mrf.mxu0
  %v942 = vadd.f32 0.0, %v941
  %v943 = vpop.f32.mrf.mxu0
  %v944 = vadd.f32 0.0, %v943
  %945 = vdwg.mxu0
  %946 = vmatprep.subr.mxu0 0.0
  %947 = vmatpush1.msra.mxu0 0.0
  %948 = vmatprep.subr.mxu0 0.0
  %949 = vmatpush1.msra.mxu0 0.0
  %950 = vmatprep.subr.mxu0 0.0
  %951 = vmatpush1.msra.mxu0 0.0
  %952 = vmatprep.subr.mxu0 0.0
  %953 = vmatpush1.msra.mxu0 0.0
  %954 = vmatprep.subr.mxu0 0.0
  %955 = vmatpush1.msra.mxu0 0.0
  %956 = vmatprep.subr.mxu0 0.0
  %957 = vmatpush1.msra.mxu0 0.0
  %958 = vmatprep.subr.mxu0 0.0
  %959 = vmatpush1.msra.mxu0 0.0
  %960 = vmatprep.subr.mxu0 0.0
  %961 = vmatpush1.msra.mxu0 0.0
  %962 = vmatprep.subr.mxu0 0.0
  %963 = vmatpush1.msra.mxu0 0.0
  %964 = vmatprep.subr.mxu0 0.0
  %965 = vmatpush1.msra.mxu0 0.0
  %966 = vmatprep.subr.mxu0 0.0
  %967 = vmatpush1.msra.mxu0 0.0
  %968 = vmatprep.subr.mxu0 0.0
  %969 = vmatpush1.msra.mxu0 0.0
  %970 = vmatprep.subr.mxu0 %v77
  %971 = vmatpush1.msra.mxu0 %v76
  %972 = vmatprep.subr.mxu0 %v69
  %973 = vmatpush1.msra.mxu0 %v68
  %974 = vmatprep.subr.mxu0 %v61
  %975 = vmatpush1.msra.mxu0 %v60
  %976 = vmatprep.subr.mxu0 %v53
  %977 = vmatpush1.msra.mxu0 %v52
  %978 = vmatprep.subr.mxu0 0.0
  %979 = vmatpush2.msra.mxu0 0.0
  %980 = vmatprep.subr.mxu0 0.0
  %981 = vmatpush2.msra.mxu0 0.0
  %982 = vmatprep.subr.mxu0 0.0
  %983 = vmatpush2.msra.mxu0 0.0
  %984 = vmatprep.subr.mxu0 0.0
  %985 = vmatpush2.msra.mxu0 0.0
  %986 = vmatprep.subr.mxu0 0.0
  %987 = vmatpush2.msra.mxu0 0.0
  %988 = vmatprep.subr.mxu0 0.0
  %989 = vmatpush2.msra.mxu0 0.0
  %990 = vmatprep.subr.mxu0 0.0
  %991 = vmatpush2.msra.mxu0 0.0
  %992 = vmatprep.subr.mxu0 0.0
  %993 = vmatpush2.msra.mxu0 0.0
  %994 = vmatprep.subr.mxu0 0.0
  %995 = vmatpush2.msra.mxu0 0.0
  %996 = vmatprep.subr.mxu0 0.0
  %997 = vmatpush2.msra.mxu0 0.0
  %998 = vmatprep.subr.mxu0 0.0
  %999 = vmatpush2.msra.mxu0 0.0
  %1000 = vmatprep.subr.mxu0 0.0
  %1001 = vmatpush2.msra.mxu0 0.0
  %1002 = vmatprep.subr.mxu0 0.0
  %1003 = vmatpush2.msra.mxu0 0.0
  %1004 = vmatprep.subr.mxu0 0.0
  %1005 = vmatpush2.msra.mxu0 0.0
  %1006 = vmatprep.subr.mxu0 0.0
  %1007 = vmatpush2.msra.mxu0 0.0
  %1008 = vmatprep.subr.mxu0 0.0
  %1009 = vmatpush2.msra.mxu0 0.0
  %1010 = vmatprep.mubr.f32.mxu0 0.0
  %1011 = vmatmul.mubr.f32.gmra.mxu0 %v80
  %v1012 = vpop.f32.mrf.mxu0
  %v1013 = vadd.f32 0.0, %v1012
  %v1014 = vpop.f32.mrf.mxu0
  %v1015 = vadd.f32 0.0, %v1014
  %1016 = vmatprep.mubr.f32.mxu0 0.0
  %1017 = vmatmul.mubr.f32.gmra.mxu0 %v83
  %v1018 = vpop.f32.mrf.mxu0
  %v1019 = vadd.f32 0.0, %v1018
  %v1020 = vpop.f32.mrf.mxu0
  %v1021 = vadd.f32 0.0, %v1020
  %1022 = vmatprep.mubr.f32.mxu0 0.0
  %1023 = vmatmul.mubr.f32.gmra.mxu0 %v86
  %v1024 = vpop.f32.mrf.mxu0
  %v1025 = vadd.f32 0.0, %v1024
  %v1026 = vpop.f32.mrf.mxu0
  %v1027 = vadd.f32 0.0, %v1026
  %1028 = vmatprep.mubr.f32.mxu0 0.0
  %1029 = vmatmul.mubr.f32.gmra.mxu0 %v89
  %v1030 = vpop.f32.mrf.mxu0
  %v1031 = vadd.f32 0.0, %v1030
  %v1032 = vpop.f32.mrf.mxu0
  %v1033 = vadd.f32 0.0, %v1032
  %1034 = vmatprep.mubr.f32.mxu0 0.0
  %1035 = vmatmul.mubr.f32.gmra.mxu0 %v92
  %v1036 = vpop.f32.mrf.mxu0
  %v1037 = vadd.f32 0.0, %v1036
  %v1038 = vpop.f32.mrf.mxu0
  %v1039 = vadd.f32 0.0, %v1038
  %1040 = vmatprep.mubr.f32.mxu0 0.0
  %1041 = vmatmul.mubr.f32.gmra.mxu0 %v95
  %v1042 = vpop.f32.mrf.mxu0
  %v1043 = vadd.f32 0.0, %v1042
  %v1044 = vpop.f32.mrf.mxu0
  %v1045 = vadd.f32 0.0, %v1044
  %1046 = vmatprep.mubr.f32.mxu0 0.0
  %1047 = vmatmul.mubr.f32.gmra.mxu0 %v98
  %v1048 = vpop.f32.mrf.mxu0
  %v1049 = vadd.f32 0.0, %v1048
  %v1050 = vpop.f32.mrf.mxu0
  %v1051 = vadd.f32 0.0, %v1050
  %1052 = vmatprep.mubr.f32.mxu0 0.0
  %1053 = vmatmul.mubr.f32.gmra.mxu0 %v101
  %v1054 = vpop.f32.mrf.mxu0
  %v1055 = vadd.f32 0.0, %v1054
  %v1056 = vpop.f32.mrf.mxu0
  %v1057 = vadd.f32 0.0, %v1056
  %1058 = vmatprep.mubr.f32.mxu0 0.0
  %1059 = vmatmul.mubr.f32.gmra.mxu0 %v104
  %v1060 = vpop.f32.mrf.mxu0
  %v1061 = vadd.f32 0.0, %v1060
  %v1062 = vpop.f32.mrf.mxu0
  %v1063 = vadd.f32 0.0, %v1062
  %1064 = vmatprep.mubr.f32.mxu0 0.0
  %1065 = vmatmul.mubr.f32.gmra.mxu0 %v107
  %v1066 = vpop.f32.mrf.mxu0
  %v1067 = vadd.f32 0.0, %v1066
  %v1068 = vpop.f32.mrf.mxu0
  %v1069 = vadd.f32 0.0, %v1068
  %1070 = vmatprep.mubr.f32.mxu0 0.0
  %1071 = vmatmul.mubr.f32.gmra.mxu0 %v110
  %v1072 = vpop.f32.mrf.mxu0
  %v1073 = vadd.f32 0.0, %v1072
  %v1074 = vpop.f32.mrf.mxu0
  %v1075 = vadd.f32 0.0, %v1074
  %1076 = vmatprep.mubr.f32.mxu0 0.0
  %1077 = vmatmul.mubr.f32.gmra.mxu0 %v113
  %v1078 = vpop.f32.mrf.mxu0
  %v1079 = vadd.f32 0.0, %v1078
  %v1080 = vpop.f32.mrf.mxu0
  %v1081 = vadd.f32 0.0, %v1080
  %1082 = vmatprep.mubr.f32.mxu0 0.0
  %1083 = vmatmul.mubr.f32.gmra.mxu0 %v116
  %v1084 = vpop.f32.mrf.mxu0
  %v1085 = vadd.f32 0.0, %v1084
  %v1086 = vpop.f32.mrf.mxu0
  %v1087 = vadd.f32 0.0, %v1086
  %1088 = vmatprep.mubr.f32.mxu0 0.0
  %1089 = vmatmul.mubr.f32.gmra.mxu0 %v119
  %v1090 = vpop.f32.mrf.mxu0
  %v1091 = vadd.f32 0.0, %v1090
  %v1092 = vpop.f32.mrf.mxu0
  %v1093 = vadd.f32 0.0, %v1092
  %1094 = vmatprep.mubr.f32.mxu0 0.0
  %1095 = vmatmul.mubr.f32.gmra.mxu0 %v122
  %v1096 = vpop.f32.mrf.mxu0
  %v1097 = vadd.f32 0.0, %v1096
  %v1098 = vpop.f32.mrf.mxu0
  %v1099 = vadd.f32 0.0, %v1098
  %1100 = vmatprep.mubr.f32.mxu0 0.0
  %1101 = vmatmul.mubr.f32.gmra.mxu0 %v125
  %v1102 = vpop.f32.mrf.mxu0
  %v1103 = vadd.f32 0.0, %v1102
  %v1104 = vpop.f32.mrf.mxu0
  %v1105 = vadd.f32 0.0, %v1104
  %1106 = vmatprep.mubr.f32.mxu0 0.0
  %1107 = vmatmul.mubr.f32.gmra.mxu0 %v128
  %v1108 = vpop.f32.mrf.mxu0
  %v1109 = vadd.f32 0.0, %v1108
  %v1110 = vpop.f32.mrf.mxu0
  %v1111 = vadd.f32 0.0, %v1110
  %1112 = vmatprep.mubr.f32.mxu0 0.0
  %1113 = vmatmul.mubr.f32.gmra.mxu0 %v131
  %v1114 = vpop.f32.mrf.mxu0
  %v1115 = vadd.f32 0.0, %v1114
  %v1116 = vpop.f32.mrf.mxu0
  %v1117 = vadd.f32 0.0, %v1116
  %1118 = vmatprep.mubr.f32.mxu0 0.0
  %1119 = vmatmul.mubr.f32.gmra.mxu0 %v134
  %v1120 = vpop.f32.mrf.mxu0
  %v1121 = vadd.f32 0.0, %v1120
  %v1122 = vpop.f32.mrf.mxu0
  %v1123 = vadd.f32 0.0, %v1122
  %1124 = vmatprep.mubr.f32.mxu0 0.0
  %1125 = vmatmul.mubr.f32.gmra.mxu0 %v137
  %v1126 = vpop.f32.mrf.mxu0
  %v1127 = vadd.f32 0.0, %v1126
  %v1128 = vpop.f32.mrf.mxu0
  %v1129 = vadd.f32 0.0, %v1128
  %1130 = vmatprep.mubr.f32.mxu0 0.0
  %1131 = vmatmul.mubr.f32.gmra.mxu0 %v140
  %v1132 = vpop.f32.mrf.mxu0
  %v1133 = vadd.f32 0.0, %v1132
  %v1134 = vpop.f32.mrf.mxu0
  %v1135 = vadd.f32 0.0, %v1134
  %1136 = vmatprep.mubr.f32.mxu0 0.0
  %1137 = vmatmul.mubr.f32.gmra.mxu0 %v143
  %v1138 = vpop.f32.mrf.mxu0
  %v1139 = vadd.f32 0.0, %v1138
  %v1140 = vpop.f32.mrf.mxu0
  %v1141 = vadd.f32 0.0, %v1140
  %1142 = vmatprep.mubr.f32.mxu0 0.0
  %1143 = vmatmul.mubr.f32.gmra.mxu0 %v146
  %v1144 = vpop.f32.mrf.mxu0
  %v1145 = vadd.f32 0.0, %v1144
  %v1146 = vpop.f32.mrf.mxu0
  %v1147 = vadd.f32 0.0, %v1146
  %1148 = vmatprep.mubr.f32.mxu0 0.0
  %1149 = vmatmul.mubr.f32.gmra.mxu0 %v149
  %v1150 = vpop.f32.mrf.mxu0
  %v1151 = vadd.f32 0.0, %v1150
  %v1152 = vpop.f32.mrf.mxu0
  %v1153 = vadd.f32 0.0, %v1152
  %1154 = vmatprep.mubr.f32.mxu0 0.0
  %1155 = vmatmul.mubr.f32.gmra.mxu0 %v152
  %v1156 = vpop.f32.mrf.mxu0
  %v1157 = vadd.f32 0.0, %v1156
  %v1158 = vpop.f32.mrf.mxu0
  %v1159 = vadd.f32 0.0, %v1158
  %1160 = vmatprep.mubr.f32.mxu0 0.0
  %1161 = vmatmul.mubr.f32.gmra.mxu0 %v155
  %v1162 = vpop.f32.mrf.mxu0
  %v1163 = vadd.f32 0.0, %v1162
  %v1164 = vpop.f32.mrf.mxu0
  %v1165 = vadd.f32 0.0, %v1164
  %1166 = vmatprep.mubr.f32.mxu0 0.0
  %1167 = vmatmul.mubr.f32.gmra.mxu0 %v158
  %v1168 = vpop.f32.mrf.mxu0
  %v1169 = vadd.f32 0.0, %v1168
  %v1170 = vpop.f32.mrf.mxu0
  %v1171 = vadd.f32 0.0, %v1170
  %1172 = vmatprep.mubr.f32.mxu0 0.0
  %1173 = vmatmul.mubr.f32.gmra.mxu0 %v161
  %v1174 = vpop.f32.mrf.mxu0
  %v1175 = vadd.f32 0.0, %v1174
  %v1176 = vpop.f32.mrf.mxu0
  %v1177 = vadd.f32 0.0, %v1176
  %1178 = vmatprep.mubr.f32.mxu0 0.0
  %1179 = vmatmul.mubr.f32.gmra.mxu0 %v164
  %v1180 = vpop.f32.mrf.mxu0
  %v1181 = vadd.f32 0.0, %v1180
  %v1182 = vpop.f32.mrf.mxu0
  %v1183 = vadd.f32 0.0, %v1182
  %1184 = vmatprep.mubr.f32.mxu0 0.0
  %1185 = vmatmul.mubr.f32.gmra.mxu0 %v167
  %v1186 = vpop.f32.mrf.mxu0
  %v1187 = vadd.f32 0.0, %v1186
  %v1188 = vpop.f32.mrf.mxu0
  %v1189 = vadd.f32 0.0, %v1188
  %1190 = vmatprep.mubr.f32.mxu0 0.0
  %1191 = vmatmul.mubr.f32.gmra.mxu0 %v170
  %v1192 = vpop.f32.mrf.mxu0
  %v1193 = vadd.f32 0.0, %v1192
  %v1194 = vpop.f32.mrf.mxu0
  %v1195 = vadd.f32 0.0, %v1194
  %1196 = vmatprep.mubr.f32.mxu0 0.0
  %1197 = vmatmul.mubr.f32.gmra.mxu0 %v173
  %v1198 = vpop.f32.mrf.mxu0
  %v1199 = vadd.f32 0.0, %v1198
  %v1200 = vpop.f32.mrf.mxu0
  %v1201 = vadd.f32 0.0, %v1200
  %1202 = vdwg.mxu0
  %v1203 = vld [vmem:[%s2] sm:$0xff]
  %v1204 = vld [vmem:[%s2 + $0x8] sm:$0xff]
  %v1205 = vld [vmem:[%s2 + $0x10] sm:$0xff]
  %v1206 = vld [vmem:[%s2 + $0x18] sm:$0xff]
  %v1207 = vld [vmem:[%s2 + $0x20] sm:$0xff]
  %v1208 = vld [vmem:[%s2 + $0x28] sm:$0xff]
  %v1209 = vld [vmem:[%s2 + $0x30] sm:$0xff]
  %v1210 = vld [vmem:[%s2 + $0x38] sm:$0xff]
  %v1211 = vld [vmem:[%s2 + $0x40] sm:$0xff]
  %v1212 = vld [vmem:[%s2 + $0x48] sm:$0xff]
  %v1213 = vld [vmem:[%s2 + $0x50] sm:$0xff]
  %v1214 = vld [vmem:[%s2 + $0x58] sm:$0xff]
  %v1215 = vld [vmem:[%s2 + $0x60] sm:$0xff]
  %v1216 = vld [vmem:[%s2 + $0x68] sm:$0xff]
  %v1217 = vld [vmem:[%s2 + $0x70] sm:$0xff]
  %v1218 = vld [vmem:[%s2 + $0x78] sm:$0xff]
  %v1219 = vld [vmem:[%s2 + $0x80] sm:$0xff]
  %v1220 = vld [vmem:[%s2 + $0x88] sm:$0xff]
  %v1221 = vld [vmem:[%s2 + $0x90] sm:$0xff]
  %v1222 = vld [vmem:[%s2 + $0x98] sm:$0xff]
  %v1223 = vld [vmem:[%s2 + $0xa0] sm:$0xff]
  %v1224 = vld [vmem:[%s2 + $0xa8] sm:$0xff]
  %v1225 = vld [vmem:[%s2 + $0xb0] sm:$0xff]
  %v1226 = vld [vmem:[%s2 + $0xb8] sm:$0xff]
  %v1227 = vld [vmem:[%s2 + $0xc0] sm:$0xff]
  %v1228 = vld [vmem:[%s2 + $0xc8] sm:$0xff]
  %v1229 = vld [vmem:[%s2 + $0xd0] sm:$0xff]
  %v1230 = vld [vmem:[%s2 + $0xd8] sm:$0xff]
  %v1231 = vld [vmem:[%s2 + $0xe0] sm:$0xff]
  %v1232 = vld [vmem:[%s2 + $0xe8] sm:$0xff]
  %v1233 = vld [vmem:[%s2 + $0xf0] sm:$0xff]
  %v1234 = vld [vmem:[%s2 + $0xf8] sm:$0xff]
  %v1235 = vmul.f32 %v242, %v1203
  %v1236 = vmul.f32 %v244, %v1204
  %v1237 = vmul.f32 %v499, %v1205
  %v1238 = vmul.f32 %v501, %v1206
  %v1239 = vmul.f32 %v756, %v1207
  %v1240 = vmul.f32 %v758, %v1208
  %v1241 = vmul.f32 %v1013, %v1209
  %v1242 = vmul.f32 %v1015, %v1210
  %v1243 = vmul.f32 %v248, %v1211
  %v1244 = vmul.f32 %v250, %v1212
  %v1245 = vmul.f32 %v505, %v1213
  %v1246 = vmul.f32 %v507, %v1214
  %v1247 = vmul.f32 %v762, %v1215
  %v1248 = vmul.f32 %v764, %v1216
  %v1249 = vmul.f32 %v1019, %v1217
  %v1250 = vmul.f32 %v1021, %v1218
  %v1251 = vmul.f32 %v254, %v1219
  %v1252 = vmul.f32 %v256, %v1220
  %v1253 = vmul.f32 %v511, %v1221
  %v1254 = vmul.f32 %v513, %v1222
  %v1255 = vmul.f32 %v768, %v1223
  %v1256 = vmul.f32 %v770, %v1224
  %v1257 = vmul.f32 %v1025, %v1225
  %v1258 = vmul.f32 %v1027, %v1226
  %v1259 = vmul.f32 %v260, %v1227
  %v1260 = vmul.f32 %v262, %v1228
  %v1261 = vmul.f32 %v517, %v1229
  %v1262 = vmul.f32 %v519, %v1230
  %v1263 = vmul.f32 %v774, %v1231
  %v1264 = vmul.f32 %v776, %v1232
  %v1265 = vmul.f32 %v1031, %v1233
  %v1266 = vmul.f32 %v1033, %v1234
  %v1267 = vmul.f32 %v266, %v1203
  %v1268 = vmul.f32 %v268, %v1204
  %v1269 = vmul.f32 %v523, %v1205
  %v1270 = vmul.f32 %v525, %v1206
  %v1271 = vmul.f32 %v780, %v1207
  %v1272 = vmul.f32 %v782, %v1208
  %v1273 = vmul.f32 %v1037, %v1209
  %v1274 = vmul.f32 %v1039, %v1210
  %v1275 = vmul.f32 %v272, %v1211
  %v1276 = vmul.f32 %v274, %v1212
  %v1277 = vmul.f32 %v529, %v1213
  %v1278 = vmul.f32 %v531, %v1214
  %v1279 = vmul.f32 %v786, %v1215
  %v1280 = vmul.f32 %v788, %v1216
  %v1281 = vmul.f32 %v1043, %v1217
  %v1282 = vmul.f32 %v1045, %v1218
  %v1283 = vmul.f32 %v278, %v1219
  %v1284 = vmul.f32 %v280, %v1220
  %v1285 = vmul.f32 %v535, %v1221
  %v1286 = vmul.f32 %v537, %v1222
  %v1287 = vmul.f32 %v792, %v1223
  %v1288 = vmul.f32 %v794, %v1224
  %v1289 = vmul.f32 %v1049, %v1225
  %v1290 = vmul.f32 %v1051, %v1226
  %v1291 = vmul.f32 %v284, %v1227
  %v1292 = vmul.f32 %v286, %v1228
  %v1293 = vmul.f32 %v541, %v1229
  %v1294 = vmul.f32 %v543, %v1230
  %v1295 = vmul.f32 %v798, %v1231
  %v1296 = vmul.f32 %v800, %v1232
  %v1297 = vmul.f32 %v1055, %v1233
  %v1298 = vmul.f32 %v1057, %v1234
  %v1299 = vmul.f32 %v290, %v1203
  %v1300 = vmul.f32 %v292, %v1204
  %v1301 = vmul.f32 %v547, %v1205
  %v1302 = vmul.f32 %v549, %v1206
  %v1303 = vmul.f32 %v804, %v1207
  %v1304 = vmul.f32 %v806, %v1208
  %v1305 = vmul.f32 %v1061, %v1209
  %v1306 = vmul.f32 %v1063, %v1210
  %v1307 = vmul.f32 %v296, %v1211
  %v1308 = vmul.f32 %v298, %v1212
  %v1309 = vmul.f32 %v553, %v1213
  %v1310 = vmul.f32 %v555, %v1214
  %v1311 = vmul.f32 %v810, %v1215
  %v1312 = vmul.f32 %v812, %v1216
  %v1313 = vmul.f32 %v1067, %v1217
  %v1314 = vmul.f32 %v1069, %v1218
  %v1315 = vmul.f32 %v302, %v1219
  %v1316 = vmul.f32 %v304, %v1220
  %v1317 = vmul.f32 %v559, %v1221
  %v1318 = vmul.f32 %v561, %v1222
  %v1319 = vmul.f32 %v816, %v1223
  %v1320 = vmul.f32 %v818, %v1224
  %v1321 = vmul.f32 %v1073, %v1225
  %v1322 = vmul.f32 %v1075, %v1226
  %v1323 = vmul.f32 %v308, %v1227
  %v1324 = vmul.f32 %v310, %v1228
  %v1325 = vmul.f32 %v565, %v1229
  %v1326 = vmul.f32 %v567, %v1230
  %v1327 = vmul.f32 %v822, %v1231
  %v1328 = vmul.f32 %v824, %v1232
  %v1329 = vmul.f32 %v1079, %v1233
  %v1330 = vmul.f32 %v1081, %v1234
  %v1331 = vmul.f32 %v314, %v1203
  %v1332 = vmul.f32 %v316, %v1204
  %v1333 = vmul.f32 %v571, %v1205
  %v1334 = vmul.f32 %v573, %v1206
  %v1335 = vmul.f32 %v828, %v1207
  %v1336 = vmul.f32 %v830, %v1208
  %v1337 = vmul.f32 %v1085, %v1209
  %v1338 = vmul.f32 %v1087, %v1210
  %v1339 = vmul.f32 %v320, %v1211
  %v1340 = vmul.f32 %v322, %v1212
  %v1341 = vmul.f32 %v577, %v1213
  %v1342 = vmul.f32 %v579, %v1214
  %v1343 = vmul.f32 %v834, %v1215
  %v1344 = vmul.f32 %v836, %v1216
  %v1345 = vmul.f32 %v1091, %v1217
  %v1346 = vmul.f32 %v1093, %v1218
  %v1347 = vmul.f32 %v326, %v1219
  %v1348 = vmul.f32 %v328, %v1220
  %v1349 = vmul.f32 %v583, %v1221
  %v1350 = vmul.f32 %v585, %v1222
  %v1351 = vmul.f32 %v840, %v1223
  %v1352 = vmul.f32 %v842, %v1224
  %v1353 = vmul.f32 %v1097, %v1225
  %v1354 = vmul.f32 %v1099, %v1226
  %v1355 = vmul.f32 %v332, %v1227
  %v1356 = vmul.f32 %v334, %v1228
  %v1357 = vmul.f32 %v589, %v1229
  %v1358 = vmul.f32 %v591, %v1230
  %v1359 = vmul.f32 %v846, %v1231
  %v1360 = vmul.f32 %v848, %v1232
  %v1361 = vmul.f32 %v1103, %v1233
  %v1362 = vmul.f32 %v1105, %v1234
  %v1363 = vmul.f32 %v338, %v1203
  %v1364 = vmul.f32 %v340, %v1204
  %v1365 = vmul.f32 %v595, %v1205
  %v1366 = vmul.f32 %v597, %v1206
  %v1367 = vmul.f32 %v852, %v1207
  %v1368 = vmul.f32 %v854, %v1208
  %v1369 = vmul.f32 %v1109, %v1209
  %v1370 = vmul.f32 %v1111, %v1210
  %v1371 = vmul.f32 %v344, %v1211
  %v1372 = vmul.f32 %v346, %v1212
  %v1373 = vmul.f32 %v601, %v1213
  %v1374 = vmul.f32 %v603, %v1214
  %v1375 = vmul.f32 %v858, %v1215
  %v1376 = vmul.f32 %v860, %v1216
  %v1377 = vmul.f32 %v1115, %v1217
  %v1378 = vmul.f32 %v1117, %v1218
  %v1379 = vmul.f32 %v350, %v1219
  %v1380 = vmul.f32 %v352, %v1220
  %v1381 = vmul.f32 %v607, %v1221
  %v1382 = vmul.f32 %v609, %v1222
  %v1383 = vmul.f32 %v864, %v1223
  %v1384 = vmul.f32 %v866, %v1224
  %v1385 = vmul.f32 %v1121, %v1225
  %v1386 = vmul.f32 %v1123, %v1226
  %v1387 = vmul.f32 %v356, %v1227
  %v1388 = vmul.f32 %v358, %v1228
  %v1389 = vmul.f32 %v613, %v1229
  %v1390 = vmul.f32 %v615, %v1230
  %v1391 = vmul.f32 %v870, %v1231
  %v1392 = vmul.f32 %v872, %v1232
  %v1393 = vmul.f32 %v1127, %v1233
  %v1394 = vmul.f32 %v1129, %v1234
  %v1395 = vmul.f32 %v362, %v1203
  %v1396 = vmul.f32 %v364, %v1204
  %v1397 = vmul.f32 %v619, %v1205
  %v1398 = vmul.f32 %v621, %v1206
  %v1399 = vmul.f32 %v876, %v1207
  %v1400 = vmul.f32 %v878, %v1208
  %v1401 = vmul.f32 %v1133, %v1209
  %v1402 = vmul.f32 %v1135, %v1210
  %v1403 = vmul.f32 %v368, %v1211
  %v1404 = vmul.f32 %v370, %v1212
  %v1405 = vmul.f32 %v625, %v1213
  %v1406 = vmul.f32 %v627, %v1214
  %v1407 = vmul.f32 %v882, %v1215
  %v1408 = vmul.f32 %v884, %v1216
  %v1409 = vmul.f32 %v1139, %v1217
  %v1410 = vmul.f32 %v1141, %v1218
  %v1411 = vmul.f32 %v374, %v1219
  %v1412 = vmul.f32 %v376, %v1220
  %v1413 = vmul.f32 %v631, %v1221
  %v1414 = vmul.f32 %v633, %v1222
  %v1415 = vmul.f32 %v888, %v1223
  %v1416 = vmul.f32 %v890, %v1224
  %v1417 = vmul.f32 %v1145, %v1225
  %v1418 = vmul.f32 %v1147, %v1226
  %v1419 = vmul.f32 %v380, %v1227
  %v1420 = vmul.f32 %v382, %v1228
  %v1421 = vmul.f32 %v637, %v1229
  %v1422 = vmul.f32 %v639, %v1230
  %v1423 = vmul.f32 %v894, %v1231
  %v1424 = vmul.f32 %v896, %v1232
  %v1425 = vmul.f32 %v1151, %v1233
  %v1426 = vmul.f32 %v1153, %v1234
  %v1427 = vmul.f32 %v386, %v1203
  %v1428 = vmul.f32 %v388, %v1204
  %v1429 = vmul.f32 %v643, %v1205
  %v1430 = vmul.f32 %v645, %v1206
  %v1431 = vmul.f32 %v900, %v1207
  %v1432 = vmul.f32 %v902, %v1208
  %v1433 = vmul.f32 %v1157, %v1209
  %v1434 = vmul.f32 %v1159, %v1210
  %v1435 = vmul.f32 %v392, %v1211
  %v1436 = vmul.f32 %v394, %v1212
  %v1437 = vmul.f32 %v649, %v1213
  %v1438 = vmul.f32 %v651, %v1214
  %v1439 = vmul.f32 %v906, %v1215
  %v1440 = vmul.f32 %v908, %v1216
  %v1441 = vmul.f32 %v1163, %v1217
  %v1442 = vmul.f32 %v1165, %v1218
  %v1443 = vmul.f32 %v398, %v1219
  %v1444 = vmul.f32 %v400, %v1220
  %v1445 = vmul.f32 %v655, %v1221
  %v1446 = vmul.f32 %v657, %v1222
  %v1447 = vmul.f32 %v912, %v1223
  %v1448 = vmul.f32 %v914, %v1224
  %v1449 = vmul.f32 %v1169, %v1225
  %v1450 = vmul.f32 %v1171, %v1226
  %v1451 = vmul.f32 %v404, %v1227
  %v1452 = vmul.f32 %v406, %v1228
  %v1453 = vmul.f32 %v661, %v1229
  %v1454 = vmul.f32 %v663, %v1230
  %v1455 = vmul.f32 %v918, %v1231
  %v1456 = vmul.f32 %v920, %v1232
  %v1457 = vmul.f32 %v1175, %v1233
  %v1458 = vmul.f32 %v1177, %v1234
  %v1459 = vmul.f32 %v410, %v1203
  %v1460 = vmul.f32 %v412, %v1204
  %v1461 = vmul.f32 %v667, %v1205
  %v1462 = vmul.f32 %v669, %v1206
  %v1463 = vmul.f32 %v924, %v1207
  %v1464 = vmul.f32 %v926, %v1208
  %v1465 = vmul.f32 %v1181, %v1209
  %v1466 = vmul.f32 %v1183, %v1210
  %v1467 = vmul.f32 %v416, %v1211
  %v1468 = vmul.f32 %v418, %v1212
  %v1469 = vmul.f32 %v673, %v1213
  %v1470 = vmul.f32 %v675, %v1214
  %v1471 = vmul.f32 %v930, %v1215
  %v1472 = vmul.f32 %v932, %v1216
  %v1473 = vmul.f32 %v1187, %v1217
  %v1474 = vmul.f32 %v1189, %v1218
  %v1475 = vmul.f32 %v422, %v1219
  %v1476 = vmul.f32 %v424, %v1220
  %v1477 = vmul.f32 %v679, %v1221
  %v1478 = vmul.f32 %v681, %v1222
  %v1479 = vmul.f32 %v936, %v1223
  %v1480 = vmul.f32 %v938, %v1224
  %v1481 = vmul.f32 %v1193, %v1225
  %v1482 = vmul.f32 %v1195, %v1226
  %v1483 = vmul.f32 %v428, %v1227
  %v1484 = vmul.f32 %v430, %v1228
  %v1485 = vmul.f32 %v685, %v1229
  %v1486 = vmul.f32 %v687, %v1230
  %v1487 = vmul.f32 %v942, %v1231
  %v1488 = vmul.f32 %v944, %v1232
  %v1489 = vmul.f32 %v1199, %v1233
  %v1490 = vmul.f32 %v1201, %v1234
  %v1491 = vadd.f32 %v1235, %v1243
  %v1492 = vadd.f32 %v1491, %v1251
  %v1493 = vadd.f32 %v1492, %v1259
  %v1494 = vrot.slane %v1493, 4
  %v1495 = vadd.f32 %v1493, %v1494
  %v1496 = vrot.slane %v1495, 2
  %v1497 = vadd.f32 %v1495, %v1496
  %v1498 = vrot.slane %v1497, 1
  %v1499 = vadd.f32 %v1497, %v1498
  %v1500 = vadd.f32 %v1236, %v1244
  %v1501 = vadd.f32 %v1500, %v1252
  %v1502 = vadd.f32 %v1501, %v1260
  %v1503 = vrot.slane %v1502, 4
  %v1504 = vadd.f32 %v1502, %v1503
  %v1505 = vrot.slane %v1504, 2
  %v1506 = vadd.f32 %v1504, %v1505
  %v1507 = vrot.slane %v1506, 1
  %v1508 = vadd.f32 %v1506, %v1507
  %v1509 = vadd.f32 %v1237, %v1245
  %v1510 = vadd.f32 %v1509, %v1253
  %v1511 = vadd.f32 %v1510, %v1261
  %v1512 = vrot.slane %v1511, 4
  %v1513 = vadd.f32 %v1511, %v1512
  %v1514 = vrot.slane %v1513, 2
  %v1515 = vadd.f32 %v1513, %v1514
  %v1516 = vrot.slane %v1515, 1
  %v1517 = vadd.f32 %v1515, %v1516
  %v1518 = vadd.f32 %v1238, %v1246
  %v1519 = vadd.f32 %v1518, %v1254
  %v1520 = vadd.f32 %v1519, %v1262
  %v1521 = vrot.slane %v1520, 4
  %v1522 = vadd.f32 %v1520, %v1521
  %v1523 = vrot.slane %v1522, 2
  %v1524 = vadd.f32 %v1522, %v1523
  %v1525 = vrot.slane %v1524, 1
  %v1526 = vadd.f32 %v1524, %v1525
  %v1527 = vadd.f32 %v1239, %v1247
  %v1528 = vadd.f32 %v1527, %v1255
  %v1529 = vadd.f32 %v1528, %v1263
  %v1530 = vrot.slane %v1529, 4
  %v1531 = vadd.f32 %v1529, %v1530
  %v1532 = vrot.slane %v1531, 2
  %v1533 = vadd.f32 %v1531, %v1532
  %v1534 = vrot.slane %v1533, 1
  %v1535 = vadd.f32 %v1533, %v1534
  %v1536 = vadd.f32 %v1240, %v1248
  %v1537 = vadd.f32 %v1536, %v1256
  %v1538 = vadd.f32 %v1537, %v1264
  %v1539 = vrot.slane %v1538, 4
  %v1540 = vadd.f32 %v1538, %v1539
  %v1541 = vrot.slane %v1540, 2
  %v1542 = vadd.f32 %v1540, %v1541
  %v1543 = vrot.slane %v1542, 1
  %v1544 = vadd.f32 %v1542, %v1543
  %v1545 = vadd.f32 %v1241, %v1249
  %v1546 = vadd.f32 %v1545, %v1257
  %v1547 = vadd.f32 %v1546, %v1265
  %v1548 = vrot.slane %v1547, 4
  %v1549 = vadd.f32 %v1547, %v1548
  %v1550 = vrot.slane %v1549, 2
  %v1551 = vadd.f32 %v1549, %v1550
  %v1552 = vrot.slane %v1551, 1
  %v1553 = vadd.f32 %v1551, %v1552
  %v1554 = vadd.f32 %v1242, %v1250
  %v1555 = vadd.f32 %v1554, %v1258
  %v1556 = vadd.f32 %v1555, %v1266
  %v1557 = vrot.slane %v1556, 4
  %v1558 = vadd.f32 %v1556, %v1557
  %v1559 = vrot.slane %v1558, 2
  %v1560 = vadd.f32 %v1558, %v1559
  %v1561 = vrot.slane %v1560, 1
  %v1562 = vadd.f32 %v1560, %v1561
  %v1563 = vadd.f32 %v1267, %v1275
  %v1564 = vadd.f32 %v1563, %v1283
  %v1565 = vadd.f32 %v1564, %v1291
  %v1566 = vrot.slane %v1565, 4
  %v1567 = vadd.f32 %v1565, %v1566
  %v1568 = vrot.slane %v1567, 2
  %v1569 = vadd.f32 %v1567, %v1568
  %v1570 = vrot.slane %v1569, 1
  %v1571 = vadd.f32 %v1569, %v1570
  %v1572 = vadd.f32 %v1268, %v1276
  %v1573 = vadd.f32 %v1572, %v1284
  %v1574 = vadd.f32 %v1573, %v1292
  %v1575 = vrot.slane %v1574, 4
  %v1576 = vadd.f32 %v1574, %v1575
  %v1577 = vrot.slane %v1576, 2
  %v1578 = vadd.f32 %v1576, %v1577
  %v1579 = vrot.slane %v1578, 1
  %v1580 = vadd.f32 %v1578, %v1579
  %v1581 = vadd.f32 %v1269, %v1277
  %v1582 = vadd.f32 %v1581, %v1285
  %v1583 = vadd.f32 %v1582, %v1293
  %v1584 = vrot.slane %v1583, 4
  %v1585 = vadd.f32 %v1583, %v1584
  %v1586 = vrot.slane %v1585, 2
  %v1587 = vadd.f32 %v1585, %v1586
  %v1588 = vrot.slane %v1587, 1
  %v1589 = vadd.f32 %v1587, %v1588
  %v1590 = vadd.f32 %v1270, %v1278
  %v1591 = vadd.f32 %v1590, %v1286
  %v1592 = vadd.f32 %v1591, %v1294
  %v1593 = vrot.slane %v1592, 4
  %v1594 = vadd.f32 %v1592, %v1593
  %v1595 = vrot.slane %v1594, 2
  %v1596 = vadd.f32 %v1594, %v1595
  %v1597 = vrot.slane %v1596, 1
  %v1598 = vadd.f32 %v1596, %v1597
  %v1599 = vadd.f32 %v1271, %v1279
  %v1600 = vadd.f32 %v1599, %v1287
  %v1601 = vadd.f32 %v1600, %v1295
  %v1602 = vrot.slane %v1601, 4
  %v1603 = vadd.f32 %v1601, %v1602
  %v1604 = vrot.slane %v1603, 2
  %v1605 = vadd.f32 %v1603, %v1604
  %v1606 = vrot.slane %v1605, 1
  %v1607 = vadd.f32 %v1605, %v1606
  %v1608 = vadd.f32 %v1272, %v1280
  %v1609 = vadd.f32 %v1608, %v1288
  %v1610 = vadd.f32 %v1609, %v1296
  %v1611 = vrot.slane %v1610, 4
  %v1612 = vadd.f32 %v1610, %v1611
  %v1613 = vrot.slane %v1612, 2
  %v1614 = vadd.f32 %v1612, %v1613
  %v1615 = vrot.slane %v1614, 1
  %v1616 = vadd.f32 %v1614, %v1615
  %v1617 = vadd.f32 %v1273, %v1281
  %v1618 = vadd.f32 %v1617, %v1289
  %v1619 = vadd.f32 %v1618, %v1297
  %v1620 = vrot.slane %v1619, 4
  %v1621 = vadd.f32 %v1619, %v1620
  %v1622 = vrot.slane %v1621, 2
  %v1623 = vadd.f32 %v1621, %v1622
  %v1624 = vrot.slane %v1623, 1
  %v1625 = vadd.f32 %v1623, %v1624
  %v1626 = vadd.f32 %v1274, %v1282
  %v1627 = vadd.f32 %v1626, %v1290
  %v1628 = vadd.f32 %v1627, %v1298
  %v1629 = vrot.slane %v1628, 4
  %v1630 = vadd.f32 %v1628, %v1629
  %v1631 = vrot.slane %v1630, 2
  %v1632 = vadd.f32 %v1630, %v1631
  %v1633 = vrot.slane %v1632, 1
  %v1634 = vadd.f32 %v1632, %v1633
  %v1635 = vadd.f32 %v1299, %v1307
  %v1636 = vadd.f32 %v1635, %v1315
  %v1637 = vadd.f32 %v1636, %v1323
  %v1638 = vrot.slane %v1637, 4
  %v1639 = vadd.f32 %v1637, %v1638
  %v1640 = vrot.slane %v1639, 2
  %v1641 = vadd.f32 %v1639, %v1640
  %v1642 = vrot.slane %v1641, 1
  %v1643 = vadd.f32 %v1641, %v1642
  %v1644 = vadd.f32 %v1300, %v1308
  %v1645 = vadd.f32 %v1644, %v1316
  %v1646 = vadd.f32 %v1645, %v1324
  %v1647 = vrot.slane %v1646, 4
  %v1648 = vadd.f32 %v1646, %v1647
  %v1649 = vrot.slane %v1648, 2
  %v1650 = vadd.f32 %v1648, %v1649
  %v1651 = vrot.slane %v1650, 1
  %v1652 = vadd.f32 %v1650, %v1651
  %v1653 = vadd.f32 %v1301, %v1309
  %v1654 = vadd.f32 %v1653, %v1317
  %v1655 = vadd.f32 %v1654, %v1325
  %v1656 = vrot.slane %v1655, 4
  %v1657 = vadd.f32 %v1655, %v1656
  %v1658 = vrot.slane %v1657, 2
  %v1659 = vadd.f32 %v1657, %v1658
  %v1660 = vrot.slane %v1659, 1
  %v1661 = vadd.f32 %v1659, %v1660
  %v1662 = vadd.f32 %v1302, %v1310
  %v1663 = vadd.f32 %v1662, %v1318
  %v1664 = vadd.f32 %v1663, %v1326
  %v1665 = vrot.slane %v1664, 4
  %v1666 = vadd.f32 %v1664, %v1665
  %v1667 = vrot.slane %v1666, 2
  %v1668 = vadd.f32 %v1666, %v1667
  %v1669 = vrot.slane %v1668, 1
  %v1670 = vadd.f32 %v1668, %v1669
  %v1671 = vadd.f32 %v1303, %v1311
  %v1672 = vadd.f32 %v1671, %v1319
  %v1673 = vadd.f32 %v1672, %v1327
  %v1674 = vrot.slane %v1673, 4
  %v1675 = vadd.f32 %v1673, %v1674
  %v1676 = vrot.slane %v1675, 2
  %v1677 = vadd.f32 %v1675, %v1676
  %v1678 = vrot.slane %v1677, 1
  %v1679 = vadd.f32 %v1677, %v1678
  %v1680 = vadd.f32 %v1304, %v1312
  %v1681 = vadd.f32 %v1680, %v1320
  %v1682 = vadd.f32 %v1681, %v1328
  %v1683 = vrot.slane %v1682, 4
  %v1684 = vadd.f32 %v1682, %v1683
  %v1685 = vrot.slane %v1684, 2
  %v1686 = vadd.f32 %v1684, %v1685
  %v1687 = vrot.slane %v1686, 1
  %v1688 = vadd.f32 %v1686, %v1687
  %v1689 = vadd.f32 %v1305, %v1313
  %v1690 = vadd.f32 %v1689, %v1321
  %v1691 = vadd.f32 %v1690, %v1329
  %v1692 = vrot.slane %v1691, 4
  %v1693 = vadd.f32 %v1691, %v1692
  %v1694 = vrot.slane %v1693, 2
  %v1695 = vadd.f32 %v1693, %v1694
  %v1696 = vrot.slane %v1695, 1
  %v1697 = vadd.f32 %v1695, %v1696
  %v1698 = vadd.f32 %v1306, %v1314
  %v1699 = vadd.f32 %v1698, %v1322
  %v1700 = vadd.f32 %v1699, %v1330
  %v1701 = vrot.slane %v1700, 4
  %v1702 = vadd.f32 %v1700, %v1701
  %v1703 = vrot.slane %v1702, 2
  %v1704 = vadd.f32 %v1702, %v1703
  %v1705 = vrot.slane %v1704, 1
  %v1706 = vadd.f32 %v1704, %v1705
  %v1707 = vadd.f32 %v1331, %v1339
  %v1708 = vadd.f32 %v1707, %v1347
  %v1709 = vadd.f32 %v1708, %v1355
  %v1710 = vrot.slane %v1709, 4
  %v1711 = vadd.f32 %v1709, %v1710
  %v1712 = vrot.slane %v1711, 2
  %v1713 = vadd.f32 %v1711, %v1712
  %v1714 = vrot.slane %v1713, 1
  %v1715 = vadd.f32 %v1713, %v1714
  %v1716 = vadd.f32 %v1332, %v1340
  %v1717 = vadd.f32 %v1716, %v1348
  %v1718 = vadd.f32 %v1717, %v1356
  %v1719 = vrot.slane %v1718, 4
  %v1720 = vadd.f32 %v1718, %v1719
  %v1721 = vrot.slane %v1720, 2
  %v1722 = vadd.f32 %v1720, %v1721
  %v1723 = vrot.slane %v1722, 1
  %v1724 = vadd.f32 %v1722, %v1723
  %v1725 = vadd.f32 %v1333, %v1341
  %v1726 = vadd.f32 %v1725, %v1349
  %v1727 = vadd.f32 %v1726, %v1357
  %v1728 = vrot.slane %v1727, 4
  %v1729 = vadd.f32 %v1727, %v1728
  %v1730 = vrot.slane %v1729, 2
  %v1731 = vadd.f32 %v1729, %v1730
  %v1732 = vrot.slane %v1731, 1
  %v1733 = vadd.f32 %v1731, %v1732
  %v1734 = vadd.f32 %v1334, %v1342
  %v1735 = vadd.f32 %v1734, %v1350
  %v1736 = vadd.f32 %v1735, %v1358
  %v1737 = vrot.slane %v1736, 4
  %v1738 = vadd.f32 %v1736, %v1737
  %v1739 = vrot.slane %v1738, 2
  %v1740 = vadd.f32 %v1738, %v1739
  %v1741 = vrot.slane %v1740, 1
  %v1742 = vadd.f32 %v1740, %v1741
  %v1743 = vadd.f32 %v1335, %v1343
  %v1744 = vadd.f32 %v1743, %v1351
  %v1745 = vadd.f32 %v1744, %v1359
  %v1746 = vrot.slane %v1745, 4
  %v1747 = vadd.f32 %v1745, %v1746
  %v1748 = vrot.slane %v1747, 2
  %v1749 = vadd.f32 %v1747, %v1748
  %v1750 = vrot.slane %v1749, 1
  %v1751 = vadd.f32 %v1749, %v1750
  %v1752 = vadd.f32 %v1336, %v1344
  %v1753 = vadd.f32 %v1752, %v1352
  %v1754 = vadd.f32 %v1753, %v1360
  %v1755 = vrot.slane %v1754, 4
  %v1756 = vadd.f32 %v1754, %v1755
  %v1757 = vrot.slane %v1756, 2
  %v1758 = vadd.f32 %v1756, %v1757
  %v1759 = vrot.slane %v1758, 1
  %v1760 = vadd.f32 %v1758, %v1759
  %v1761 = vadd.f32 %v1337, %v1345
  %v1762 = vadd.f32 %v1761, %v1353
  %v1763 = vadd.f32 %v1762, %v1361
  %v1764 = vrot.slane %v1763, 4
  %v1765 = vadd.f32 %v1763, %v1764
  %v1766 = vrot.slane %v1765, 2
  %v1767 = vadd.f32 %v1765, %v1766
  %v1768 = vrot.slane %v1767, 1
  %v1769 = vadd.f32 %v1767, %v1768
  %v1770 = vadd.f32 %v1338, %v1346
  %v1771 = vadd.f32 %v1770, %v1354
  %v1772 = vadd.f32 %v1771, %v1362
  %v1773 = vrot.slane %v1772, 4
  %v1774 = vadd.f32 %v1772, %v1773
  %v1775 = vrot.slane %v1774, 2
  %v1776 = vadd.f32 %v1774, %v1775
  %v1777 = vrot.slane %v1776, 1
  %v1778 = vadd.f32 %v1776, %v1777
  %v1779 = vadd.f32 %v1363, %v1371
  %v1780 = vadd.f32 %v1779, %v1379
  %v1781 = vadd.f32 %v1780, %v1387
  %v1782 = vrot.slane %v1781, 4
  %v1783 = vadd.f32 %v1781, %v1782
  %v1784 = vrot.slane %v1783, 2
  %v1785 = vadd.f32 %v1783, %v1784
  %v1786 = vrot.slane %v1785, 1
  %v1787 = vadd.f32 %v1785, %v1786
  %v1788 = vadd.f32 %v1364, %v1372
  %v1789 = vadd.f32 %v1788, %v1380
  %v1790 = vadd.f32 %v1789, %v1388
  %v1791 = vrot.slane %v1790, 4
  %v1792 = vadd.f32 %v1790, %v1791
  %v1793 = vrot.slane %v1792, 2
  %v1794 = vadd.f32 %v1792, %v1793
  %v1795 = vrot.slane %v1794, 1
  %v1796 = vadd.f32 %v1794, %v1795
  %v1797 = vadd.f32 %v1365, %v1373
  %v1798 = vadd.f32 %v1797, %v1381
  %v1799 = vadd.f32 %v1798, %v1389
  %v1800 = vrot.slane %v1799, 4
  %v1801 = vadd.f32 %v1799, %v1800
  %v1802 = vrot.slane %v1801, 2
  %v1803 = vadd.f32 %v1801, %v1802
  %v1804 = vrot.slane %v1803, 1
  %v1805 = vadd.f32 %v1803, %v1804
  %v1806 = vadd.f32 %v1366, %v1374
  %v1807 = vadd.f32 %v1806, %v1382
  %v1808 = vadd.f32 %v1807, %v1390
  %v1809 = vrot.slane %v1808, 4
  %v1810 = vadd.f32 %v1808, %v1809
  %v1811 = vrot.slane %v1810, 2
  %v1812 = vadd.f32 %v1810, %v1811
  %v1813 = vrot.slane %v1812, 1
  %v1814 = vadd.f32 %v1812, %v1813
  %v1815 = vadd.f32 %v1367, %v1375
  %v1816 = vadd.f32 %v1815, %v1383
  %v1817 = vadd.f32 %v1816, %v1391
  %v1818 = vrot.slane %v1817, 4
  %v1819 = vadd.f32 %v1817, %v1818
  %v1820 = vrot.slane %v1819, 2
  %v1821 = vadd.f32 %v1819, %v1820
  %v1822 = vrot.slane %v1821, 1
  %v1823 = vadd.f32 %v1821, %v1822
  %v1824 = vadd.f32 %v1368, %v1376
  %v1825 = vadd.f32 %v1824, %v1384
  %v1826 = vadd.f32 %v1825, %v1392
  %v1827 = vrot.slane %v1826, 4
  %v1828 = vadd.f32 %v1826, %v1827
  %v1829 = vrot.slane %v1828, 2
  %v1830 = vadd.f32 %v1828, %v1829
  %v1831 = vrot.slane %v1830, 1
  %v1832 = vadd.f32 %v1830, %v1831
  %v1833 = vadd.f32 %v1369, %v1377
  %v1834 = vadd.f32 %v1833, %v1385
  %v1835 = vadd.f32 %v1834, %v1393
  %v1836 = vrot.slane %v1835, 4
  %v1837 = vadd.f32 %v1835, %v1836
  %v1838 = vrot.slane %v1837, 2
  %v1839 = vadd.f32 %v1837, %v1838
  %v1840 = vrot.slane %v1839, 1
  %v1841 = vadd.f32 %v1839, %v1840
  %v1842 = vadd.f32 %v1370, %v1378
  %v1843 = vadd.f32 %v1842, %v1386
  %v1844 = vadd.f32 %v1843, %v1394
  %v1845 = vrot.slane %v1844, 4
  %v1846 = vadd.f32 %v1844, %v1845
  %v1847 = vrot.slane %v1846, 2
  %v1848 = vadd.f32 %v1846, %v1847
  %v1849 = vrot.slane %v1848, 1
  %v1850 = vadd.f32 %v1848, %v1849
  %v1851 = vadd.f32 %v1395, %v1403
  %v1852 = vadd.f32 %v1851, %v1411
  %v1853 = vadd.f32 %v1852, %v1419
  %v1854 = vrot.slane %v1853, 4
  %v1855 = vadd.f32 %v1853, %v1854
  %v1856 = vrot.slane %v1855, 2
  %v1857 = vadd.f32 %v1855, %v1856
  %v1858 = vrot.slane %v1857, 1
  %v1859 = vadd.f32 %v1857, %v1858
  %v1860 = vadd.f32 %v1396, %v1404
  %v1861 = vadd.f32 %v1860, %v1412
  %v1862 = vadd.f32 %v1861, %v1420
  %v1863 = vrot.slane %v1862, 4
  %v1864 = vadd.f32 %v1862, %v1863
  %v1865 = vrot.slane %v1864, 2
  %v1866 = vadd.f32 %v1864, %v1865
  %v1867 = vrot.slane %v1866, 1
  %v1868 = vadd.f32 %v1866, %v1867
  %v1869 = vadd.f32 %v1397, %v1405
  %v1870 = vadd.f32 %v1869, %v1413
  %v1871 = vadd.f32 %v1870, %v1421
  %v1872 = vrot.slane %v1871, 4
  %v1873 = vadd.f32 %v1871, %v1872
  %v1874 = vrot.slane %v1873, 2
  %v1875 = vadd.f32 %v1873, %v1874
  %v1876 = vrot.slane %v1875, 1
  %v1877 = vadd.f32 %v1875, %v1876
  %v1878 = vadd.f32 %v1398, %v1406
  %v1879 = vadd.f32 %v1878, %v1414
  %v1880 = vadd.f32 %v1879, %v1422
  %v1881 = vrot.slane %v1880, 4
  %v1882 = vadd.f32 %v1880, %v1881
  %v1883 = vrot.slane %v1882, 2
  %v1884 = vadd.f32 %v1882, %v1883
  %v1885 = vrot.slane %v1884, 1
  %v1886 = vadd.f32 %v1884, %v1885
  %v1887 = vadd.f32 %v1399, %v1407
  %v1888 = vadd.f32 %v1887, %v1415
  %v1889 = vadd.f32 %v1888, %v1423
  %v1890 = vrot.slane %v1889, 4
  %v1891 = vadd.f32 %v1889, %v1890
  %v1892 = vrot.slane %v1891, 2
  %v1893 = vadd.f32 %v1891, %v1892
  %v1894 = vrot.slane %v1893, 1
  %v1895 = vadd.f32 %v1893, %v1894
  %v1896 = vadd.f32 %v1400, %v1408
  %v1897 = vadd.f32 %v1896, %v1416
  %v1898 = vadd.f32 %v1897, %v1424
  %v1899 = vrot.slane %v1898, 4
  %v1900 = vadd.f32 %v1898, %v1899
  %v1901 = vrot.slane %v1900, 2
  %v1902 = vadd.f32 %v1900, %v1901
  %v1903 = vrot.slane %v1902, 1
  %v1904 = vadd.f32 %v1902, %v1903
  %v1905 = vadd.f32 %v1401, %v1409
  %v1906 = vadd.f32 %v1905, %v1417
  %v1907 = vadd.f32 %v1906, %v1425
  %v1908 = vrot.slane %v1907, 4
  %v1909 = vadd.f32 %v1907, %v1908
  %v1910 = vrot.slane %v1909, 2
  %v1911 = vadd.f32 %v1909, %v1910
  %v1912 = vrot.slane %v1911, 1
  %v1913 = vadd.f32 %v1911, %v1912
  %v1914 = vadd.f32 %v1402, %v1410
  %v1915 = vadd.f32 %v1914, %v1418
  %v1916 = vadd.f32 %v1915, %v1426
  %v1917 = vrot.slane %v1916, 4
  %v1918 = vadd.f32 %v1916, %v1917
  %v1919 = vrot.slane %v1918, 2
  %v1920 = vadd.f32 %v1918, %v1919
  %v1921 = vrot.slane %v1920, 1
  %v1922 = vadd.f32 %v1920, %v1921
  %v1923 = vadd.f32 %v1427, %v1435
  %v1924 = vadd.f32 %v1923, %v1443
  %v1925 = vadd.f32 %v1924, %v1451
  %v1926 = vrot.slane %v1925, 4
  %v1927 = vadd.f32 %v1925, %v1926
  %v1928 = vrot.slane %v1927, 2
  %v1929 = vadd.f32 %v1927, %v1928
  %v1930 = vrot.slane %v1929, 1
  %v1931 = vadd.f32 %v1929, %v1930
  %v1932 = vadd.f32 %v1428, %v1436
  %v1933 = vadd.f32 %v1932, %v1444
  %v1934 = vadd.f32 %v1933, %v1452
  %v1935 = vrot.slane %v1934, 4
  %v1936 = vadd.f32 %v1934, %v1935
  %v1937 = vrot.slane %v1936, 2
  %v1938 = vadd.f32 %v1936, %v1937
  %v1939 = vrot.slane %v1938, 1
  %v1940 = vadd.f32 %v1938, %v1939
  %v1941 = vadd.f32 %v1429, %v1437
  %v1942 = vadd.f32 %v1941, %v1445
  %v1943 = vadd.f32 %v1942, %v1453
  %v1944 = vrot.slane %v1943, 4
  %v1945 = vadd.f32 %v1943, %v1944
  %v1946 = vrot.slane %v1945, 2
  %v1947 = vadd.f32 %v1945, %v1946
  %v1948 = vrot.slane %v1947, 1
  %v1949 = vadd.f32 %v1947, %v1948
  %v1950 = vadd.f32 %v1430, %v1438
  %v1951 = vadd.f32 %v1950, %v1446
  %v1952 = vadd.f32 %v1951, %v1454
  %v1953 = vrot.slane %v1952, 4
  %v1954 = vadd.f32 %v1952, %v1953
  %v1955 = vrot.slane %v1954, 2
  %v1956 = vadd.f32 %v1954, %v1955
  %v1957 = vrot.slane %v1956, 1
  %v1958 = vadd.f32 %v1956, %v1957
  %v1959 = vadd.f32 %v1431, %v1439
  %v1960 = vadd.f32 %v1959, %v1447
  %v1961 = vadd.f32 %v1960, %v1455
  %v1962 = vrot.slane %v1961, 4
  %v1963 = vadd.f32 %v1961, %v1962
  %v1964 = vrot.slane %v1963, 2
  %v1965 = vadd.f32 %v1963, %v1964
  %v1966 = vrot.slane %v1965, 1
  %v1967 = vadd.f32 %v1965, %v1966
  %v1968 = vadd.f32 %v1432, %v1440
  %v1969 = vadd.f32 %v1968, %v1448
  %v1970 = vadd.f32 %v1969, %v1456
  %v1971 = vrot.slane %v1970, 4
  %v1972 = vadd.f32 %v1970, %v1971
  %v1973 = vrot.slane %v1972, 2
  %v1974 = vadd.f32 %v1972, %v1973
  %v1975 = vrot.slane %v1974, 1
  %v1976 = vadd.f32 %v1974, %v1975
  %v1977 = vadd.f32 %v1433, %v1441
  %v1978 = vadd.f32 %v1977, %v1449
  %v1979 = vadd.f32 %v1978, %v1457
  %v1980 = vrot.slane %v1979, 4
  %v1981 = vadd.f32 %v1979, %v1980
  %v1982 = vrot.slane %v1981, 2
  %v1983 = vadd.f32 %v1981, %v1982
  %v1984 = vrot.slane %v1983, 1
  %v1985 = vadd.f32 %v1983, %v1984
  %v1986 = vadd.f32 %v1434, %v1442
  %v1987 = vadd.f32 %v1986, %v1450
  %v1988 = vadd.f32 %v1987, %v1458
  %v1989 = vrot.slane %v1988, 4
  %v1990 = vadd.f32 %v1988, %v1989
  %v1991 = vrot.slane %v1990, 2
  %v1992 = vadd.f32 %v1990, %v1991
  %v1993 = vrot.slane %v1992, 1
  %v1994 = vadd.f32 %v1992, %v1993
  %v1995 = vadd.f32 %v1459, %v1467
  %v1996 = vadd.f32 %v1995, %v1475
  %v1997 = vadd.f32 %v1996, %v1483
  %v1998 = vrot.slane %v1997, 4
  %v1999 = vadd.f32 %v1997, %v1998
  %v2000 = vrot.slane %v1999, 2
  %v2001 = vadd.f32 %v1999, %v2000
  %v2002 = vrot.slane %v2001, 1
  %v2003 = vadd.f32 %v2001, %v2002
  %v2004 = vadd.f32 %v1460, %v1468
  %v2005 = vadd.f32 %v2004, %v1476
  %v2006 = vadd.f32 %v2005, %v1484
  %v2007 = vrot.slane %v2006, 4
  %v2008 = vadd.f32 %v2006, %v2007
  %v2009 = vrot.slane %v2008, 2
  %v2010 = vadd.f32 %v2008, %v2009
  %v2011 = vrot.slane %v2010, 1
  %v2012 = vadd.f32 %v2010, %v2011
  %v2013 = vadd.f32 %v1461, %v1469
  %v2014 = vadd.f32 %v2013, %v1477
  %v2015 = vadd.f32 %v2014, %v1485
  %v2016 = vrot.slane %v2015, 4
  %v2017 = vadd.f32 %v2015, %v2016
  %v2018 = vrot.slane %v2017, 2
  %v2019 = vadd.f32 %v2017, %v2018
  %v2020 = vrot.slane %v2019, 1
  %v2021 = vadd.f32 %v2019, %v2020
  %v2022 = vadd.f32 %v1462, %v1470
  %v2023 = vadd.f32 %v2022, %v1478
  %v2024 = vadd.f32 %v2023, %v1486
  %v2025 = vrot.slane %v2024, 4
  %v2026 = vadd.f32 %v2024, %v2025
  %v2027 = vrot.slane %v2026, 2
  %v2028 = vadd.f32 %v2026, %v2027
  %v2029 = vrot.slane %v2028, 1
  %v2030 = vadd.f32 %v2028, %v2029
  %v2031 = vadd.f32 %v1463, %v1471
  %v2032 = vadd.f32 %v2031, %v1479
  %v2033 = vadd.f32 %v2032, %v1487
  %v2034 = vrot.slane %v2033, 4
  %v2035 = vadd.f32 %v2033, %v2034
  %v2036 = vrot.slane %v2035, 2
  %v2037 = vadd.f32 %v2035, %v2036
  %v2038 = vrot.slane %v2037, 1
  %v2039 = vadd.f32 %v2037, %v2038
  %v2040 = vadd.f32 %v1464, %v1472
  %v2041 = vadd.f32 %v2040, %v1480
  %v2042 = vadd.f32 %v2041, %v1488
  %v2043 = vrot.slane %v2042, 4
  %v2044 = vadd.f32 %v2042, %v2043
  %v2045 = vrot.slane %v2044, 2
  %v2046 = vadd.f32 %v2044, %v2045
  %v2047 = vrot.slane %v2046, 1
  %v2048 = vadd.f32 %v2046, %v2047
  %v2049 = vadd.f32 %v1465, %v1473
  %v2050 = vadd.f32 %v2049, %v1481
  %v2051 = vadd.f32 %v2050, %v1489
  %v2052 = vrot.slane %v2051, 4
  %v2053 = vadd.f32 %v2051, %v2052
  %v2054 = vrot.slane %v2053, 2
  %v2055 = vadd.f32 %v2053, %v2054
  %v2056 = vrot.slane %v2055, 1
  %v2057 = vadd.f32 %v2055, %v2056
  %v2058 = vadd.f32 %v1466, %v1474
  %v2059 = vadd.f32 %v2058, %v1482
  %v2060 = vadd.f32 %v2059, %v1490
  %v2061 = vrot.slane %v2060, 4
  %v2062 = vadd.f32 %v2060, %v2061
  %v2063 = vrot.slane %v2062, 2
  %v2064 = vadd.f32 %v2062, %v2063
  %v2065 = vrot.slane %v2064, 1
  %v2066 = vadd.f32 %v2064, %v2065
  %vm2131 = vcmask 1041409
  %v2132 = vsel %vm2131, %v1571, %v1499
  %vm2133 = vcmask 1042434
  %v2134 = vsel %vm2133, %v1643, %v2132
  %vm2135 = vcmask 1043459
  %v2136 = vsel %vm2135, %v1715, %v2134
  %vm2137 = vcmask 1044484
  %v2138 = vsel %vm2137, %v1787, %v2136
  %vm2139 = vcmask 1045509
  %v2140 = vsel %vm2139, %v1859, %v2138
  %vm2141 = vcmask 1046534
  %v2142 = vsel %vm2141, %v1931, %v2140
  %vm2143 = vcmask 1047559
  %v2144 = vsel %vm2143, %v2003, %v2142
  %v2145 = vsel %vm2131, %v1580, %v1508
  %v2146 = vsel %vm2133, %v1652, %v2145
  %v2147 = vsel %vm2135, %v1724, %v2146
  %v2148 = vsel %vm2137, %v1796, %v2147
  %v2149 = vsel %vm2139, %v1868, %v2148
  %v2150 = vsel %vm2141, %v1940, %v2149
  %v2151 = vsel %vm2143, %v2012, %v2150
  %v2152 = vsel %vm2131, %v1589, %v1517
  %v2153 = vsel %vm2133, %v1661, %v2152
  %v2154 = vsel %vm2135, %v1733, %v2153
  %v2155 = vsel %vm2137, %v1805, %v2154
  %v2156 = vsel %vm2139, %v1877, %v2155
  %v2157 = vsel %vm2141, %v1949, %v2156
  %v2158 = vsel %vm2143, %v2021, %v2157
  %v2159 = vsel %vm2131, %v1598, %v1526
  %v2160 = vsel %vm2133, %v1670, %v2159
  %v2161 = vsel %vm2135, %v1742, %v2160
  %v2162 = vsel %vm2137, %v1814, %v2161
  %v2163 = vsel %vm2139, %v1886, %v2162
  %v2164 = vsel %vm2141, %v1958, %v2163
  %v2165 = vsel %vm2143, %v2030, %v2164
  %v2166 = vsel %vm2131, %v1607, %v1535
  %v2167 = vsel %vm2133, %v1679, %v2166
  %v2168 = vsel %vm2135, %v1751, %v2167
  %v2169 = vsel %vm2137, %v1823, %v2168
  %v2170 = vsel %vm2139, %v1895, %v2169
  %v2171 = vsel %vm2141, %v1967, %v2170
  %v2172 = vsel %vm2143, %v2039, %v2171
  %v2173 = vsel %vm2131, %v1616, %v1544
  %v2174 = vsel %vm2133, %v1688, %v2173
  %v2175 = vsel %vm2135, %v1760, %v2174
  %v2176 = vsel %vm2137, %v1832, %v2175
  %v2177 = vsel %vm2139, %v1904, %v2176
  %v2178 = vsel %vm2141, %v1976, %v2177
  %v2179 = vsel %vm2143, %v2048, %v2178
  %v2180 = vsel %vm2131, %v1625, %v1553
  %v2181 = vsel %vm2133, %v1697, %v2180
  %v2182 = vsel %vm2135, %v1769, %v2181
  %v2183 = vsel %vm2137, %v1841, %v2182
  %v2184 = vsel %vm2139, %v1913, %v2183
  %v2185 = vsel %vm2141, %v1985, %v2184
  %v2186 = vsel %vm2143, %v2057, %v2185
  %v2187 = vsel %vm2131, %v1634, %v1562
  %v2188 = vsel %vm2133, %v1706, %v2187
  %v2189 = vsel %vm2135, %v1778, %v2188
  %v2190 = vsel %vm2137, %v1850, %v2189
  %v2191 = vsel %vm2139, %v1922, %v2190
  %v2192 = vsel %vm2141, %v1994, %v2191
  %v2193 = vsel %vm2143, %v2066, %v2192
  %2202 = vst [vmem:[%s3] sm:$0xff] %v2144
  %2203 = vst [vmem:[%s3 + $0x8] sm:$0xff] %v2151
  %2204 = vst [vmem:[%s3 + $0x10] sm:$0xff] %v2158
  %2205 = vst [vmem:[%s3 + $0x18] sm:$0xff] %v2165
  %2206 = vst [vmem:[%s3 + $0x20] sm:$0xff] %v2172
  %2207 = vst [vmem:[%s3 + $0x28] sm:$0xff] %v2179
  %2208 = vst [vmem:[%s3 + $0x30] sm:$0xff] %v2186
  %2209 = vst [vmem:[%s3 + $0x38] sm:$0xff] %v2193
  // Predicated region
  $region14: #{inverse_model_forward.1} parent=0 // pred_check
    _
  $region15: #{inverse_model_forward.1} parent=0 // pred_check_branch
    %2211 = sbr.rel (0) target = $region17
  $region16: #{inverse_model_forward.1} parent=0 // pred_region
    _
  $region17: #{inverse_model_forward.1} parent=0 // pred_fallthru
    _
  // Predicated region
  $region18: #{inverse_model_forward.1} parent=0 // pred_check
    _
  $region19: #{inverse_model_forward.1} parent=0 // pred_check_branch
    %2213 = sbr.rel (0) target = $region21
  $region20: #{inverse_model_forward.1} parent=0 // pred_region
    _
  $region21: #{inverse_model_forward.1} parent=0 // pred_fallthru
    _

</llo_original>
